<compile_context>
chip_gen: v7x
topology: tpu7x:2x2x1
jax: 0.10.0
libtpu: 0.0.40
codegen_flags: <defaults>
</compile_context>

<pallas_src>
import math
from functools import reduce

import jax
import jax.numpy as jnp
from jax.experimental import pallas as pl
from jax.experimental.pallas import tpu as pltpu


def _round_up(x, m):
    return -(-x // m) * m


def _vmem_capacity_bytes():
    try:
        return int(pltpu.get_tpu_info().vmem_capacity_bytes)
    except Exception:
        return 64 << 20  # conservative (v7x per-core VMEM)


def _choose_tile_l(L, cap):
    """Pick a row tile: multiple of 8, >= 2 grid steps when possible, and a
    divisor of L when one exists (no wasted padded rows)."""
    cap = max(8, cap - cap % 8)
    upper = min(cap, (L // 2) - ((L // 2) % 8))
    for t in range(upper, 0, -8):
        if L % t == 0:
            return t
    if L > cap:
        return cap  # many tiles, clamped partial last block
    if L >= 64:
        # Two tiles with a clamped partial last block (< 8 wasted rows) so both
        # v7x TensorCores get work even for awkward L (e.g. 196 = 14*14).
        return min(cap, _round_up(-(-L // 2), 8))
    return L  # tiny problem: one full-extent tile


def _footprint_bytes(TL, ndim, half, hidden, weight_bufs):
    f32, bf16 = 4, 2
    coords_buf = TL * 128 * f32                       # (TL, ndim) lane-padded to 128
    out_buf = TL * _round_up(hidden, 128) * f32
    wf_buf = _round_up(ndim, 8) * _round_up(half, 128) * f32
    w_buf = _round_up(half, 8) * _round_up(hidden, 128) * bf16
    bias_buf = 8 * _round_up(hidden, 128) * f32
    return 2 * (coords_buf + out_buf) + weight_bufs * (wf_buf + 2 * w_buf + bias_buf)


def _make_fourier_pos_kernel(ndim):
    def kernel(coords_ref, wf_ref, wsin_ref, wcos_ref, b_ref, out_ref):
        # coords_ref : (TL, ndim)   wf_ref : (ndim, H/2)
        # wsin_ref/wcos_ref : (H/2, H) bf16   b_ref : (1, H)   out_ref : (TL, H)
        coords = coords_ref[...]
        wf = wf_ref[...]

        # features = coords @ wf as an unrolled VPU outer-product sum
        # (K = ndim = 2-3 would waste the MXU and serialize with the real matmuls).
        f = coords[:, 0:1] * wf[0:1, :]
        for c in range(1, ndim):
            f = f + coords[:, c : c + 1] * wf[c : c + 1, :]

        # cat([sin, cos], -1) / sqrt(H/2) @ w_fc1.T ==
        #   sin(f) @ w_sin + cos(f) @ w_cos   (scale folded into the bf16 weights)
        s = jnp.sin(f).astype(jnp.bfloat16)
        c_ = jnp.cos(f).astype(jnp.bfloat16)
        out = jnp.dot(s, wsin_ref[...], preferred_element_type=jnp.float32)
        out = out + jnp.dot(c_, wcos_ref[...], preferred_element_type=jnp.float32)
        out_ref[...] = (out + b_ref[...]).astype(out_ref.dtype)

    return kernel


def fourier_position_pallas(dims, w_fourier, w_fc1, b_fc1, *, tile_l=None):
    """dims: sequence of ints. Returns (1, prod(dims), hidden) float32."""
    dims = tuple(int(d) for d in dims)
    ndim = len(dims)
    half = w_fourier.shape[-1]
    hidden = w_fc1.shape[0]
    L = reduce(lambda a, b: a * b, dims, 1)

    # Normalized coordinate grid (torch.meshgrid(indexing='ij'), stack(-1), flatten).
    lens = [jnp.linspace(-1.0, 1.0, d, dtype=jnp.float32) for d in dims]
    mesh = jnp.meshgrid(*lens, indexing="ij")
    coords = jnp.stack(mesh, axis=-1).reshape(L, ndim)

    # Fold the 1/sqrt(H/2) feature scale into the constant fc1 weight, split it
    # into the sin- and cos-feature halves (kills the lane-dim concat), and cast
    # to bf16 for the MXU; accumulation stays f32 inside the kernel.
    scale = 1.0 / math.sqrt(half)
    w_t = (w_fc1.astype(jnp.float32).T) * scale               # (hidden, hidden)
    w_sin = w_t[:half, :].astype(jnp.bfloat16)                # multiplies sin(f)
    w_cos = w_t[half:, :].astype(jnp.bfloat16)                # multiplies cos(f)
    bias = (
        b_fc1 if b_fc1 is not None else jnp.zeros((hidden,), jnp.float32)
    ).astype(jnp.float32).reshape(1, hidden)
    wf = w_fourier.astype(jnp.float32)

    # Generation-aware tile cap and VMEM ceiling (v5e/v6e: 128 MiB, v7x: 64 MiB).
    vmem_cap = _vmem_capacity_bytes()
    big_vmem = vmem_cap >= (100 << 20)
    if tile_l is None:
        tile_l = 2048 if big_vmem else 1024
    max_limit = (96 << 20) if big_vmem else (48 << 20)

    TL = _choose_tile_l(L, tile_l)
    num_tiles = pl.cdiv(L, TL)

    kernel = _make_fourier_pos_kernel(ndim)

    def resident_spec(block_shape, single_buffer):
        idx = lambda i: tuple(0 for _ in block_shape)
        if single_buffer and hasattr(pl, "Buffered"):
            try:
                return pl.BlockSpec(block_shape, idx, pipeline_mode=pl.Buffered(1))
            except TypeError:
                pass
        return pl.BlockSpec(block_shape, idx)

    def run(single_buffer):
        weight_bufs = 1 if single_buffer else 2
        vmem_limit = _footprint_bytes(TL, ndim, half, hidden, weight_bufs) + (4 << 20)
        vmem_limit = int(min(max(vmem_limit, 16 << 20), max_limit))
        return pl.pallas_call(
            kernel,
            out_shape=jax.ShapeDtypeStruct((L, hidden), jnp.float32),
            grid_spec=pl.GridSpec(
                grid=(num_tiles,),
                in_specs=[
                    pl.BlockSpec((TL, ndim), lambda i: (i, 0)),          # coords (tiled)
                    resident_spec((ndim, half), single_buffer),          # wf
                    resident_spec((half, hidden), single_buffer),        # w_sin
                    resident_spec((half, hidden), single_buffer),        # w_cos
                    resident_spec((1, hidden), single_buffer),           # bias
                ],
                out_specs=pl.BlockSpec((TL, hidden), lambda i: (i, 0)),
            ),
            compiler_params=pltpu.CompilerParams(
                dimension_semantics=("parallel",),
                vmem_limit_bytes=vmem_limit,
            ),
        )(coords, wf, w_sin, w_cos, bias)

    try:
        out = run(True)
    except Exception:
        # Fallback if single-buffered (Buffered(1)) resident operands are not
        # supported by the installed Pallas/Mosaic version.
        out = run(False)

    return out.reshape(1, L, hidden)


def init_params(key, hidden_size, spatial_size):
    """Deterministic synthetic init mirroring FourierPosition.__init__ shapes."""
    ndim = len(spatial_size)
    k1, k2 = jax.random.split(key)
    # nn.init.normal_(w_fourier, std=1.0)
    w_fourier = jax.random.normal(k1, (ndim, hidden_size // 2), dtype=jnp.float32)
    # nn.Linear(hidden, hidden) weight: uniform(-1/sqrt(H), 1/sqrt(H)); bias zeroed.
    bound = 1.0 / math.sqrt(hidden_size)
    w_fc1 = jax.random.uniform(
        k2, (hidden_size, hidden_size), minval=-bound, maxval=bound, dtype=jnp.float32
    )
    b_fc1 = jnp.zeros((hidden_size,), dtype=jnp.float32)
    return w_fourier, w_fc1, b_fc1


def fourier_position_ref(dims, w_fourier, w_fc1, b_fc1):
    """Pure-JAX f32 reference of the PyTorch forward."""
    lens = [jnp.linspace(-1.0, 1.0, d, dtype=jnp.float32) for d in dims]
    mesh = jnp.meshgrid(*lens, indexing="ij")
    grid = jnp.stack(mesh, axis=-1).reshape(1, -1, len(dims))
    feats = grid @ w_fourier
    feats = jnp.concatenate([jnp.sin(feats), jnp.cos(feats)], axis=-1)
    feats = feats / math.sqrt(w_fourier.shape[-1])
    return feats @ w_fc1.T + b_fc1


if __name__ == "__main__":
    hidden_size = 32
    spatial_size = (8, 8)  # L = 64 positions, 2 spatial coords

    key = jax.random.PRNGKey(0)
    w_fourier, w_fc1, b_fc1 = init_params(key, hidden_size, spatial_size)

    out = fourier_position_pallas(spatial_size, w_fourier, w_fc1, b_fc1)
    out = jax.block_until_ready(out)

    ref = fourier_position_ref(spatial_size, w_fourier, w_fc1, b_fc1)
    assert out.shape == (1, 64, hidden_size), out.shape
    # bf16 weights/activations in the matmul (f32 accumulation): loosened tolerance.
    max_err = float(jnp.max(jnp.abs(out - ref)))
    assert max_err < 2e-2, max_err

    print("KERNEL_OK")
</pallas_src>

<mosaic_0001>
module attributes {stable_mosaic.version = 11 : i64} {
  func.func @kernel(%arg0: i32, %arg1: memref<32x2xf32, #tpu.memory_space<vmem>>, %arg2: memref<2x16xf32, #tpu.memory_space<vmem>>, %arg3: memref<16x32xbf16, #tpu.memory_space<vmem>>, %arg4: memref<16x32xbf16, #tpu.memory_space<vmem>>, %arg5: memref<1x32xf32, #tpu.memory_space<vmem>>, %arg6: memref<32x32xf32, #tpu.memory_space<vmem>>) attributes {dimension_semantics = [#tpu.dimension_semantics<parallel>], iteration_bounds = array<i64: 2>, scalar_prefetch = 0 : i64, scratch_operands = 0 : i64, tpu.core_type = #tpu.core_type<tc>, window_params = [{transform_indices = @transform_0, window_bounds = array<i64: 32, 2>}, {pipeline_mode = #tpu.pipeline_mode<synchronous>, transform_indices = @transform_1, window_bounds = array<i64: 2, 16>}, {pipeline_mode = #tpu.pipeline_mode<synchronous>, transform_indices = @transform_2, window_bounds = array<i64: 16, 32>}, {pipeline_mode = #tpu.pipeline_mode<synchronous>, transform_indices = @transform_3, window_bounds = array<i64: 16, 32>}, {pipeline_mode = #tpu.pipeline_mode<synchronous>, transform_indices = @transform_4, window_bounds = array<i64: 1, 32>}, {transform_indices = @transform_5, window_bounds = array<i64: 32, 32>}]} {
    %c0 = arith.constant 0 : index
    %c0_0 = arith.constant 0 : index
    %0 = vector.load %arg1[%c0, %c0_0] : memref<32x2xf32, #tpu.memory_space<vmem>>, vector<32x2xf32>
    %c0_1 = arith.constant 0 : index
    %c0_2 = arith.constant 0 : index
    %1 = vector.load %arg2[%c0_1, %c0_2] : memref<2x16xf32, #tpu.memory_space<vmem>>, vector<2x16xf32>
    %2 = vector.extract_strided_slice %0 {offsets = [0, 0], sizes = [32, 1], strides = [1, 1]} : vector<32x2xf32> to vector<32x1xf32>
    %3 = vector.extract_strided_slice %1 {offsets = [0, 0], sizes = [1, 16], strides = [1, 1]} : vector<2x16xf32> to vector<1x16xf32>
    %4 = vector.broadcast %2 : vector<32x1xf32> to vector<32x16xf32>
    %5 = vector.broadcast %3 : vector<1x16xf32> to vector<32x16xf32>
    %6 = arith.mulf %4, %5 : vector<32x16xf32>
    %7 = vector.extract_strided_slice %0 {offsets = [0, 1], sizes = [32, 1], strides = [1, 1]} : vector<32x2xf32> to vector<32x1xf32>
    %8 = vector.extract_strided_slice %1 {offsets = [1, 0], sizes = [1, 16], strides = [1, 1]} : vector<2x16xf32> to vector<1x16xf32>
    %9 = vector.broadcast %7 : vector<32x1xf32> to vector<32x16xf32>
    %10 = vector.broadcast %8 : vector<1x16xf32> to vector<32x16xf32>
    %11 = arith.mulf %9, %10 : vector<32x16xf32>
    %12 = arith.addf %6, %11 : vector<32x16xf32>
    %13 = math.sin %12 : vector<32x16xf32>
    %14 = arith.truncf %13 : vector<32x16xf32> to vector<32x16xbf16>
    %15 = math.cos %12 : vector<32x16xf32>
    %16 = arith.truncf %15 : vector<32x16xf32> to vector<32x16xbf16>
    %c0_3 = arith.constant 0 : index
    %c0_4 = arith.constant 0 : index
    %17 = vector.load %arg3[%c0_3, %c0_4] : memref<16x32xbf16, #tpu.memory_space<vmem>>, vector<16x32xbf16>
    %cst = arith.constant dense<0.000000e+00> : vector<32x32xf32>
    %18 = tpu.matmul %14, %17, %cst {dimension_numbers = #tpu.dot_dimension_numbers<[1], [0], [0], [1], [0, 0, 1, 1], [], []>} : vector<32x16xbf16>, vector<16x32xbf16>, vector<32x32xf32> -> vector<32x32xf32>
    %c0_5 = arith.constant 0 : index
    %c0_6 = arith.constant 0 : index
    %19 = vector.load %arg4[%c0_5, %c0_6] : memref<16x32xbf16, #tpu.memory_space<vmem>>, vector<16x32xbf16>
    %cst_7 = arith.constant dense<0.000000e+00> : vector<32x32xf32>
    %20 = tpu.matmul %16, %19, %cst_7 {dimension_numbers = #tpu.dot_dimension_numbers<[1], [0], [0], [1], [0, 0, 1, 1], [], []>} : vector<32x16xbf16>, vector<16x32xbf16>, vector<32x32xf32> -> vector<32x32xf32>
    %21 = arith.addf %18, %20 : vector<32x32xf32>
    %c0_8 = arith.constant 0 : index
    %c0_9 = arith.constant 0 : index
    %22 = vector.load %arg5[%c0_8, %c0_9] : memref<1x32xf32, #tpu.memory_space<vmem>>, vector<1x32xf32>
    %23 = vector.broadcast %22 : vector<1x32xf32> to vector<32x32xf32>
    %24 = arith.addf %21, %23 : vector<32x32xf32>
    %c0_10 = arith.constant 0 : index
    %c0_11 = arith.constant 0 : index
    %25 = vector.load %arg6[%c0_10, %c0_11] : memref<32x32xf32, #tpu.memory_space<vmem>>, vector<32x32xf32>
    tpu.vector_store %arg6[%c0_10, %c0_11], %24 {strides = array<i32>} : memref<32x32xf32, #tpu.memory_space<vmem>>, vector<32x32xf32>,
    return
  }
  func.func @transform_0(%arg0: i32) -> (i32, i32) {
    %c0_i32 = arith.constant 0 : i32
    %c0_i32_0 = arith.constant 0 : i32
    return %arg0, %c0_i32 : i32, i32
  }
  func.func @transform_1(%arg0: i32) -> (i32, i32) {
    %c0_i32 = arith.constant 0 : i32
    %c0_i32_0 = arith.constant 0 : i32
    %c0_i32_1 = arith.constant 0 : i32
    return %c0_i32, %c0_i32_0 : i32, i32
  }
  func.func @transform_2(%arg0: i32) -> (i32, i32) {
    %c0_i32 = arith.constant 0 : i32
    %c0_i32_0 = arith.constant 0 : i32
    %c0_i32_1 = arith.constant 0 : i32
    return %c0_i32, %c0_i32_0 : i32, i32
  }
  func.func @transform_3(%arg0: i32) -> (i32, i32) {
    %c0_i32 = arith.constant 0 : i32
    %c0_i32_0 = arith.constant 0 : i32
    %c0_i32_1 = arith.constant 0 : i32
    return %c0_i32, %c0_i32_0 : i32, i32
  }
  func.func @transform_4(%arg0: i32) -> (i32, i32) {
    %c0_i32 = arith.constant 0 : i32
    %c0_i32_0 = arith.constant 0 : i32
    %c0_i32_1 = arith.constant 0 : i32
    return %c0_i32, %c0_i32_0 : i32, i32
  }
  func.func @transform_5(%arg0: i32) -> (i32, i32) {
    %c0_i32 = arith.constant 0 : i32
    %c0_i32_0 = arith.constant 0 : i32
    return %arg0, %c0_i32 : i32, i32
  }
}

module attributes {stable_mosaic.version = 11 : i64} {
  func.func @kernel(%arg0: i32, %arg1: memref<32x2xf32, #tpu.memory_space<vmem>>, %arg2: memref<2x16xf32, #tpu.memory_space<vmem>>, %arg3: memref<16x32xbf16, #tpu.memory_space<vmem>>, %arg4: memref<16x32xbf16, #tpu.memory_space<vmem>>, %arg5: memref<1x32xf32, #tpu.memory_space<vmem>>, %arg6: memref<32x32xf32, #tpu.memory_space<vmem>>) attributes {dimension_semantics = [#tpu.dimension_semantics<parallel>], iteration_bounds = array<i64: 2>, scalar_prefetch = 0 : i64, scratch_operands = 0 : i64, tpu.core_type = #tpu.core_type<tc>, window_params = [{transform_indices = @transform_0, window_bounds = array<i64: 32, 2>}, {pipeline_mode = #tpu.pipeline_mode<synchronous>, transform_indices = @transform_1, window_bounds = array<i64: 2, 16>}, {pipeline_mode = #tpu.pipeline_mode<synchronous>, transform_indices = @transform_2, window_bounds = array<i64: 16, 32>}, {pipeline_mode = #tpu.pipeline_mode<synchronous>, transform_indices = @transform_3, window_bounds = array<i64: 16, 32>}, {pipeline_mode = #tpu.pipeline_mode<synchronous>, transform_indices = @transform_4, window_bounds = array<i64: 1, 32>}, {transform_indices = @transform_5, window_bounds = array<i64: 32, 32>}]} {
    %c0 = arith.constant 0 : index
    %c0_0 = arith.constant 0 : index
    %0 = vector.load %arg1[%c0, %c0_0] : memref<32x2xf32, #tpu.memory_space<vmem>>, vector<32x2xf32>
    %c0_1 = arith.constant 0 : index
    %c0_2 = arith.constant 0 : index
    %1 = vector.load %arg2[%c0_1, %c0_2] : memref<2x16xf32, #tpu.memory_space<vmem>>, vector<2x16xf32>
    %2 = vector.extract_strided_slice %0 {offsets = [0, 0], sizes = [32, 1], strides = [1, 1]} : vector<32x2xf32> to vector<32x1xf32>
    %3 = vector.extract_strided_slice %1 {offsets = [0, 0], sizes = [1, 16], strides = [1, 1]} : vector<2x16xf32> to vector<1x16xf32>
    %4 = vector.broadcast %2 : vector<32x1xf32> to vector<32x16xf32>
    %5 = vector.broadcast %3 : vector<1x16xf32> to vector<32x16xf32>
    %6 = arith.mulf %4, %5 : vector<32x16xf32>
    %7 = vector.extract_strided_slice %0 {offsets = [0, 1], sizes = [32, 1], strides = [1, 1]} : vector<32x2xf32> to vector<32x1xf32>
    %8 = vector.extract_strided_slice %1 {offsets = [1, 0], sizes = [1, 16], strides = [1, 1]} : vector<2x16xf32> to vector<1x16xf32>
    %9 = vector.broadcast %7 : vector<32x1xf32> to vector<32x16xf32>
    %10 = vector.broadcast %8 : vector<1x16xf32> to vector<32x16xf32>
    %11 = arith.mulf %9, %10 : vector<32x16xf32>
    %12 = arith.addf %6, %11 : vector<32x16xf32>
    %13 = math.sin %12 : vector<32x16xf32>
    %14 = arith.truncf %13 : vector<32x16xf32> to vector<32x16xbf16>
    %15 = math.cos %12 : vector<32x16xf32>
    %16 = arith.truncf %15 : vector<32x16xf32> to vector<32x16xbf16>
    %c0_3 = arith.constant 0 : index
    %c0_4 = arith.constant 0 : index
    %17 = vector.load %arg3[%c0_3, %c0_4] : memref<16x32xbf16, #tpu.memory_space<vmem>>, vector<16x32xbf16>
    %cst = arith.constant dense<0.000000e+00> : vector<32x32xf32>
    %18 = tpu.matmul %14, %17, %cst {dimension_numbers = #tpu.dot_dimension_numbers<[1], [0], [0], [1], [0, 0, 1, 1], [], []>} : vector<32x16xbf16>, vector<16x32xbf16>, vector<32x32xf32> -> vector<32x32xf32>
    %c0_5 = arith.constant 0 : index
    %c0_6 = arith.constant 0 : index
    %19 = vector.load %arg4[%c0_5, %c0_6] : memref<16x32xbf16, #tpu.memory_space<vmem>>, vector<16x32xbf16>
    %cst_7 = arith.constant dense<0.000000e+00> : vector<32x32xf32>
    %20 = tpu.matmul %16, %19, %cst_7 {dimension_numbers = #tpu.dot_dimension_numbers<[1], [0], [0], [1], [0, 0, 1, 1], [], []>} : vector<32x16xbf16>, vector<16x32xbf16>, vector<32x32xf32> -> vector<32x32xf32>
    %21 = arith.addf %18, %20 : vector<32x32xf32>
    %c0_8 = arith.constant 0 : index
    %c0_9 = arith.constant 0 : index
    %22 = vector.load %arg5[%c0_8, %c0_9] : memref<1x32xf32, #tpu.memory_space<vmem>>, vector<1x32xf32>
    %23 = vector.broadcast %22 : vector<1x32xf32> to vector<32x32xf32>
    %24 = arith.addf %21, %23 : vector<32x32xf32>
    %c0_10 = arith.constant 0 : index
    %c0_11 = arith.constant 0 : index
    %25 = vector.load %arg6[%c0_10, %c0_11] : memref<32x32xf32, #tpu.memory_space<vmem>>, vector<32x32xf32>
    tpu.vector_store %arg6[%c0_10, %c0_11], %24 {strides = array<i32>} : memref<32x32xf32, #tpu.memory_space<vmem>>, vector<32x32xf32>,
    return
  }
  func.func @transform_0(%arg0: i32) -> (i32, i32) {
    %c0_i32 = arith.constant 0 : i32
    %c0_i32_0 = arith.constant 0 : i32
    return %arg0, %c0_i32 : i32, i32
  }
  func.func @transform_1(%arg0: i32) -> (i32, i32) {
    %c0_i32 = arith.constant 0 : i32
    %c0_i32_0 = arith.constant 0 : i32
    %c0_i32_1 = arith.constant 0 : i32
    return %c0_i32, %c0_i32_0 : i32, i32
  }
  func.func @transform_2(%arg0: i32) -> (i32, i32) {
    %c0_i32 = arith.constant 0 : i32
    %c0_i32_0 = arith.constant 0 : i32
    %c0_i32_1 = arith.constant 0 : i32
    return %c0_i32, %c0_i32_0 : i32, i32
  }
  func.func @transform_3(%arg0: i32) -> (i32, i32) {
    %c0_i32 = arith.constant 0 : i32
    %c0_i32_0 = arith.constant 0 : i32
    %c0_i32_1 = arith.constant 0 : i32
    return %c0_i32, %c0_i32_0 : i32, i32
  }
  func.func @transform_4(%arg0: i32) -> (i32, i32) {
    %c0_i32 = arith.constant 0 : i32
    %c0_i32_0 = arith.constant 0 : i32
    %c0_i32_1 = arith.constant 0 : i32
    return %c0_i32, %c0_i32_0 : i32, i32
  }
  func.func @transform_5(%arg0: i32) -> (i32, i32) {
    %c0_i32 = arith.constant 0 : i32
    %c0_i32_0 = arith.constant 0 : i32
    return %arg0, %c0_i32 : i32, i32
  }
}

</mosaic_0001>

<llo_original>
// kernel: tpu_custom_call.1
$region0: #{tpu_custom_call.1}
  #allocation0 [shape = 'u32[]', space=smem, size = 0x4, offset = 0x4, fixed_abs, tag = 'smem constant byte address 0x4 - core index']
  #allocation1 [shape = 'u32[144,128]{1,0:T(1,128)}', space=vmem, size = 0x12000, scoped, tag = 'internal scratch']
  %s0 = inlined_call_operand.vmem [shape: f32[64,2], index: 0, kind: input, shape index: {}]
  %s1 = inlined_call_operand.vmem [shape: f32[2,16], index: 1, kind: input, shape index: {}]
  %s2 = inlined_call_operand.vmem [shape: bf16[16,32], index: 2, kind: input, shape index: {}]
  %s3 = inlined_call_operand.vmem [shape: bf16[16,32], index: 3, kind: input, shape index: {}]
  %s4 = inlined_call_operand.vmem [shape: f32[1,32], index: 4, kind: input, shape index: {}]
  %s5 = inlined_call_operand.vmem [shape: f32[64,32], index: 5, kind: output, shape index: {}]
  %s6 = sld [smem:[#allocation0]]
  $region53: #{tpu_custom_call.1} parent=0
    _
  %s8 = ssub.s32 1, %s6
  %s9 = scalar_select 0, %s8, %s6
  loop: start=0, step=1, limit=4
  $region2: #{tpu_custom_call.1} parent=0 // loop_pre_header
    _
  $region3: #{tpu_custom_call.1} parent=0 // loop_header
    %s11 = sphi 0, %s15
    %p12 = scmp.ge.s32.totalorder %s11, 4
    %s21 = sphi 0, %s23
    %s24 = sphi 0, %s21
    %s25 = sphi 0, %s24
    %s41 = sphi 0, %s25
    %s45 = sphi 0, %s45
    %s47 = sphi 0, %s45
    %s48 = sphi 0, %s47
    %s62 = sphi 0, %s48
    %s66 = sphi 0, %s66
    %s68 = sphi 0, %s66
    %s69 = sphi 0, %s68
    %s83 = sphi 0, %s69
    %s87 = sphi 0, %s87
    %s89 = sphi 0, %s87
    %s90 = sphi 0, %s89
    %s104 = sphi 0, %s90
    %s108 = sphi 0, %s108
    %s110 = sphi 0, %s108
    %s111 = sphi 0, %s110
    %s125 = sphi 0, %s111
    %s131 = sphi 0, %s133
    %s134 = sphi 0, %s131
    %s135 = sphi 0, %s134
    %s151 = sphi 0, %s135
  $region4: #{tpu_custom_call.1} parent=0 // loop_header_branch
    %14 = sbr.rel (%p12) target = $region8
  $region5: #{tpu_custom_call.1} parent=0 // loop_body
    %s16 = ssub.s32 %s11, 1
    %s17 = ssub.s32 %s11, 2
    %s18 = sadd.s32 %s11, 1
    %s19 = ssub.s32 %s11, %s18
    %p20 = scmp.eq.s32.totalorder %s19, 0
    %s22 = sadd.s32 %s21, 1
    %s23 = scalar_select %p20, %s21, %s22
    %p26 = pneg %p20
    %p27 = scmp.eq.s32.totalorder %s11, 1
    %p28 = por %p26, %p27
    %p29 = scmp.ne.s32.totalorder %s21, %s24
    %p30 = scmp.eq.s32.totalorder %s11, 0
    %p31 = por %p29, %p30
    %p32 = scmp.ne.s32.totalorder %s21, %s24
    %p33 = scmp.eq.s32.totalorder %s16, 1
    %p34 = por %p32, %p33
    %p35 = scmp.ne.s32.totalorder %s24, %s25
    %p36 = scmp.eq.s32.totalorder %s16, 0
    %p37 = por %p35, %p36
    %p38 = scmp.ne.s32.totalorder %s24, %s25
    %p39 = scmp.eq.s32.totalorder %s17, 1
    %p40 = por %p38, %p39
    %p42 = scmp.ne.s32.totalorder %s25, %s41
    %p43 = scmp.eq.s32.totalorder %s17, 0
    %p44 = por %p42, %p43
    %s46 = sadd.s32 %s45, 1
    %p49 = scmp.eq.s32.totalorder %s11, 1
    %p50 = scmp.ne.s32.totalorder %s45, %s47
    %p51 = scmp.eq.s32.totalorder %s11, 0
    %p52 = por %p50, %p51
    %p53 = scmp.ne.s32.totalorder %s45, %s47
    %p54 = scmp.eq.s32.totalorder %s16, 1
    %p55 = por %p53, %p54
    %p56 = scmp.ne.s32.totalorder %s47, %s48
    %p57 = scmp.eq.s32.totalorder %s16, 0
    %p58 = por %p56, %p57
    %p59 = scmp.ne.s32.totalorder %s47, %s48
    %p60 = scmp.eq.s32.totalorder %s17, 1
    %p61 = por %p59, %p60
    %p63 = scmp.ne.s32.totalorder %s48, %s62
    %p64 = scmp.eq.s32.totalorder %s17, 0
    %p65 = por %p63, %p64
    %s67 = sadd.s32 %s66, 1
    %p70 = scmp.eq.s32.totalorder %s11, 1
    %p71 = scmp.ne.s32.totalorder %s66, %s68
    %p72 = scmp.eq.s32.totalorder %s11, 0
    %p73 = por %p71, %p72
    %p74 = scmp.ne.s32.totalorder %s66, %s68
    %p75 = scmp.eq.s32.totalorder %s16, 1
    %p76 = por %p74, %p75
    %p77 = scmp.ne.s32.totalorder %s68, %s69
    %p78 = scmp.eq.s32.totalorder %s16, 0
    %p79 = por %p77, %p78
    %p80 = scmp.ne.s32.totalorder %s68, %s69
    %p81 = scmp.eq.s32.totalorder %s17, 1
    %p82 = por %p80, %p81
    %p84 = scmp.ne.s32.totalorder %s69, %s83
    %p85 = scmp.eq.s32.totalorder %s17, 0
    %p86 = por %p84, %p85
    %s88 = sadd.s32 %s87, 1
    %p91 = scmp.eq.s32.totalorder %s11, 1
    %p92 = scmp.ne.s32.totalorder %s87, %s89
    %p93 = scmp.eq.s32.totalorder %s11, 0
    %p94 = por %p92, %p93
    %p95 = scmp.ne.s32.totalorder %s87, %s89
    %p96 = scmp.eq.s32.totalorder %s16, 1
    %p97 = por %p95, %p96
    %p98 = scmp.ne.s32.totalorder %s89, %s90
    %p99 = scmp.eq.s32.totalorder %s16, 0
    %p100 = por %p98, %p99
    %p101 = scmp.ne.s32.totalorder %s89, %s90
    %p102 = scmp.eq.s32.totalorder %s17, 1
    %p103 = por %p101, %p102
    %p105 = scmp.ne.s32.totalorder %s90, %s104
    %p106 = scmp.eq.s32.totalorder %s17, 0
    %p107 = por %p105, %p106
    %s109 = sadd.s32 %s108, 1
    %p112 = scmp.eq.s32.totalorder %s11, 1
    %p113 = scmp.ne.s32.totalorder %s108, %s110
    %p114 = scmp.eq.s32.totalorder %s11, 0
    %p115 = por %p113, %p114
    %p116 = scmp.ne.s32.totalorder %s108, %s110
    %p117 = scmp.eq.s32.totalorder %s16, 1
    %p118 = por %p116, %p117
    %p119 = scmp.ne.s32.totalorder %s110, %s111
    %p120 = scmp.eq.s32.totalorder %s16, 0
    %p121 = por %p119, %p120
    %p122 = scmp.ne.s32.totalorder %s110, %s111
    %p123 = scmp.eq.s32.totalorder %s17, 1
    %p124 = por %p122, %p123
    %p126 = scmp.ne.s32.totalorder %s111, %s125
    %p127 = scmp.eq.s32.totalorder %s17, 0
    %p128 = por %p126, %p127
    %s129 = ssub.s32 %s11, %s18
    %p130 = scmp.eq.s32.totalorder %s129, 0
    %s132 = sadd.s32 %s131, 1
    %s133 = scalar_select %p130, %s131, %s132
    %p136 = pneg %p130
    %p137 = scmp.eq.s32.totalorder %s11, 1
    %p138 = por %p136, %p137
    %p139 = scmp.ne.s32.totalorder %s131, %s134
    %p140 = scmp.eq.s32.totalorder %s11, 0
    %p141 = por %p139, %p140
    %p142 = scmp.ne.s32.totalorder %s131, %s134
    %p143 = scmp.eq.s32.totalorder %s16, 1
    %p144 = por %p142, %p143
    %p145 = scmp.ne.s32.totalorder %s134, %s135
    %p146 = scmp.eq.s32.totalorder %s16, 0
    %p147 = por %p145, %p146
    %p148 = scmp.ne.s32.totalorder %s134, %s135
    %p149 = scmp.eq.s32.totalorder %s17, 1
    %p150 = por %p148, %p149
    %p152 = scmp.ne.s32.totalorder %s135, %s151
    %p153 = scmp.eq.s32.totalorder %s17, 0
    %p154 = por %p152, %p153
    %p155 = scmp.le.s32.totalorder 1, %s11
    %p156 = scmp.lt.s32.totalorder %s11, 3
    %p157 = pnand %p155, %p156
    %p158 = pneg %p157
    // Predicated region
    $region9: #{tpu_custom_call.1} parent=5 // pred_check
      _
    $region10: #{tpu_custom_call.1} parent=5 // pred_check_branch
      %160 = sbr.rel (%p157) target = $region12
    $region11: #{tpu_custom_call.1} parent=5 // pred_region
      %s161 = ssub.s32 %s11, 1
      // Predicated region
      $region13: #{tpu_custom_call.1} parent=11 // pred_check
        %p162 = pneg %p58
      $region14: #{tpu_custom_call.1} parent=11 // pred_check_branch
        %164 = sbr.rel (%p162) target = $region16
      $region15: #{tpu_custom_call.1} parent=11 // pred_region
        _
      $region16: #{tpu_custom_call.1} parent=11 // pred_fallthru
        _
      // Predicated region
      $region17: #{tpu_custom_call.1} parent=11 // pred_check
        %p165 = pneg %p79
      $region18: #{tpu_custom_call.1} parent=11 // pred_check_branch
        %167 = sbr.rel (%p165) target = $region20
      $region19: #{tpu_custom_call.1} parent=11 // pred_region
        _
      $region20: #{tpu_custom_call.1} parent=11 // pred_fallthru
        _
      // Predicated region
      $region21: #{tpu_custom_call.1} parent=11 // pred_check
        %p168 = pneg %p100
      $region22: #{tpu_custom_call.1} parent=11 // pred_check_branch
        %170 = sbr.rel (%p168) target = $region24
      $region23: #{tpu_custom_call.1} parent=11 // pred_region
        _
      $region24: #{tpu_custom_call.1} parent=11 // pred_fallthru
        _
      // Predicated region
      $region25: #{tpu_custom_call.1} parent=11 // pred_check
        %p171 = pneg %p121
      $region26: #{tpu_custom_call.1} parent=11 // pred_check_branch
        %173 = sbr.rel (%p171) target = $region28
      $region27: #{tpu_custom_call.1} parent=11 // pred_region
        _
      $region28: #{tpu_custom_call.1} parent=11 // pred_fallthru
        _
    $region12: #{tpu_custom_call.1} parent=5 // pred_fallthru
      _
    %p174 = scmp.lt.s32.totalorder %s11, 2
    // Predicated region
    $region29: #{tpu_custom_call.1} parent=5 // pred_check
      %p175 = pneg %p174
    $region30: #{tpu_custom_call.1} parent=5 // pred_check_branch
      %177 = sbr.rel (%p175) target = $region32
    $region31: #{tpu_custom_call.1} parent=5 // pred_region
      // Predicated region
      $region33: #{tpu_custom_call.1} parent=31 // pred_check
        %p178 = pneg %p31
      $region34: #{tpu_custom_call.1} parent=31 // pred_check_branch
        %180 = sbr.rel (%p178) target = $region36
      $region35: #{tpu_custom_call.1} parent=31 // pred_region
        %s181 = smul.u32 4, %s11
        %p182 = scmp.lt.s32.totalorder %s181, 7
        %s183 = scalar_select %p182, %s181, 7
        %s184 = smul.addr %s183, 8
        %s185 = scalar_lea.vmem %s0, %s184
        %s186 = smul.u32 4, %s11
      $region36: #{tpu_custom_call.1} parent=31 // pred_fallthru
        _
    $region32: #{tpu_custom_call.1} parent=5 // pred_fallthru
      _
    %p187 = scmp.le.s32.totalorder 1, %s11
    %p188 = scmp.lt.s32.totalorder %s11, 3
    %p189 = pnand %p187, %p188
    %p190 = pneg %p189
    // Predicated region
    $region37: #{tpu_custom_call.1} parent=5 // pred_check
      _
    $region38: #{tpu_custom_call.1} parent=5 // pred_check_branch
      %192 = sbr.rel (%p189) target = $region40
    $region39: #{tpu_custom_call.1} parent=5 // pred_region
      %s193 = ssub.s32 %s11, 1
      %s194 = smul.u32 4, %s16
      %p195 = scmp.lt.s32.totalorder %s194, 7
      %s196 = scalar_select %p195, %s194, 7
      %s197 = smul.addr %s196, 8
      %s198 = scalar_lea.vmem %s0, %s197
      %p199 = pneg %p37
      %p200 = pneg %p34
      %p201 = pneg %p58
      %p202 = pneg %p55
      %p203 = pneg %p79
      %p204 = pneg %p76
      %p205 = pneg %p100
      %p206 = pneg %p97
      %p207 = pneg %p121
      %p208 = pneg %p118
      %p209 = pneg %p147
      %p210 = pneg %p144
      %s211 = smul.u32 4, %s16
      %p212 = scmp.lt.s32.totalorder %s211, 7
      %s213 = scalar_select %p212, %s211, 7
      %s214 = smul.addr %s213, 8
      %s215 = scalar_lea.vmem %s5, %s214
      %s216 = smul.u32 4, %s16
      %p217 = scmp.lt.s32.totalorder %s216, 7
      %s218 = scalar_select %p217, %s216, 7
      %s219 = smul.addr %s218, 8
      %s220 = scalar_lea.vmem %s0, %s219
      %s221 = smul.u32 4, %s16
      %s222 = smul.u32 4, %s16
      %p223 = scmp.lt.s32.totalorder %s222, 7
      %s224 = scalar_select %p223, %s222, 7
      %s225 = smul.addr %s224, 8
      %s226 = scalar_lea.vmem %s5, %s225
      %s227 = smul.u32 4, %s16
      %v229 = vld [vmem:[%s220] sm:$0xff]
      %v230 = vld [vmem:[%s220 + $0x8] sm:$0xff]
      %v231 = vld [vmem:[%s220 + $0x10] sm:$0xff]
      %v232 = vld [vmem:[%s220 + $0x18] sm:$0xff]
      %v233 = vld [vmem:[%s1] sm:$0x3]
      %235 = vset.pattern.permute.xlu0 0
      %236 = vperm.xlu0 %235, %v229
      %v237 = vpop.permute.xlu0 %236
      %240 = vset.pattern.permute.xlu0 0
      %241 = vperm.xlu0 %240, %v230
      %v242 = vpop.permute.xlu0 %241
      %245 = vset.pattern.permute.xlu0 0
      %246 = vperm.xlu0 %245, %v231
      %v247 = vpop.permute.xlu0 %246
      %250 = vset.pattern.permute.xlu0 0
      %251 = vperm.xlu0 %250, %v232
      %v252 = vpop.permute.xlu0 %251
      %v254 = vlaneseq
      %v255 = vshrl.u32 %v254, 7
      %v256 = vsub.s32 0, %v255
      %v257 = vrot.slane %v233, %v256
      %v258 = vmul.f32 %v237, %v257
      %v259 = vmul.f32 %v242, %v257
      %v260 = vmul.f32 %v247, %v257
      %v261 = vmul.f32 %v252, %v257
      %262 = vset.pattern.permute.xlu0 1
      %263 = vperm.xlu0 %262, %v229
      %v264 = vpop.permute.xlu0 %263
      %266 = vset.pattern.permute.xlu0 1
      %267 = vperm.xlu0 %266, %v230
      %v268 = vpop.permute.xlu0 %267
      %270 = vset.pattern.permute.xlu0 1
      %271 = vperm.xlu0 %270, %v231
      %v272 = vpop.permute.xlu0 %271
      %274 = vset.pattern.permute.xlu0 1
      %275 = vperm.xlu0 %274, %v232
      %v276 = vpop.permute.xlu0 %275
      %v278 = vlaneseq
      %v279 = vshrl.u32 %v278, 7
      %v280 = vsub.s32 1, %v279
      %v281 = vrot.slane %v233, %v280
      %v282 = vmul.f32 %v264, %v281
      %v283 = vmul.f32 %v268, %v281
      %v284 = vmul.f32 %v272, %v281
      %v285 = vmul.f32 %v276, %v281
      %v286 = vadd.f32 %v258, %v282
      %v287 = vadd.f32 %v259, %v283
      %v288 = vadd.f32 %v260, %v284
      %v289 = vadd.f32 %v261, %v285
      %v290 = vand.u32 2147483647, %v286
      %vm291 = vcmp.le.f32.partialorder %v290, 0.7853982
      %vm292 = vcmp.lt.s32.totalorder %v286, 0
      %v293 = vand.u32 %v286, 2139095040
      %v294 = vshrl.u32 %v293, 23
      %v295 = vsub.s32 %v294, 127
      %v296 = vand.u32 2147483647, %v286
      %v297 = vand.u32 %v296, 8388607
      %v298 = vor.u32 %v297, 8388608
      %v299 = vsub.s32 0, %v298
      %v300 = vadd.s32 %v295, 1
      %vm301 = vcmp.gt.s32.totalorder %v300, 0
      %v302 = vsel %vm301, %v300, 0
      %v303 = vshrl.u32 %v302, 5
      %v304 = vand.u32 %v302, 31
      %v305 = vsub.s32 32, %v304
      %v306 = vshrl.u32 683565275, %v305
      %v307 = vshll.u32 683565275, %v304
      %v308 = vshrl.u32 2475754826, %v305
      %v309 = vor.u32 %v307, %v308
      %v310 = vshll.u32 2475754826, %v304
      %v311 = vshrl.u32 2131351028, %v305
      %v312 = vor.u32 %v310, %v311
      %v313 = vshll.u32 2131351028, %v304
      %v314 = vshrl.u32 2102212464, %v305
      %v315 = vor.u32 %v313, %v314
      %v316 = vshll.u32 2102212464, %v304
      %v317 = vshrl.u32 920167782, %v305
      %v318 = vor.u32 %v316, %v317
      %v319 = vshll.u32 920167782, %v304
      %v320 = vshrl.u32 1326507024, %v305
      %v321 = vor.u32 %v319, %v320
      %vm322 = vcmp.lt.s32.totalorder %v303, 1
      %vm323 = vcmp.lt.s32.totalorder %v303, 2
      %vm324 = vcmp.lt.s32.totalorder %v303, 3
      %vm325 = vcmp.lt.s32.totalorder %v303, 4
      %v326 = vsel %vm322, %v306, %v309
      %v327 = vsel %vm325, %v315, 2102212464
      %v328 = vsel %vm324, %v312, %v327
      %v329 = vsel %vm323, %v326, %v328
      %v330 = vsel %vm322, %v309, %v312
      %v331 = vsel %vm325, %v318, 920167782
      %v332 = vsel %vm324, %v315, %v331
      %v333 = vsel %vm323, %v330, %v332
      %v334 = vsel %vm322, %v312, %v315
      %v335 = vsel %vm325, %v321, 1326507024
      %v336 = vsel %vm324, %v318, %v335
      %v337 = vsel %vm323, %v334, %v336
      %v338 = vshll.u32 %v298, 8
      %v339 = vmul.u32.u64.compose %v338, %v337
      %v340 = vextract.low.u32 %v339
      %v341 = vextract.high.u32 %v339
      %v342 = vmul.u32.u64.compose %v338, %v333
      %v343 = vextract.low.u32 %v342
      %v344 = vextract.high.u32 %v342
      %v345 = vmul.u32 %v338, %v329
      %v346 = vadd.s32 %v341, %v343
      %vm347 = vc.u32 %v341, %v343
      %v348 = vadd.s32 %v344, 1
      %v349 = vsel %vm347, %v348, %v344
      %v350 = vadd.s32 %v345, %v349
      %v351 = vadd.s32 %v350, 536870912
      %v352 = vshrl.u32 %v351, 30
      %v353 = vshll.u32 %v352, 30
      %v354 = vsub.s32 %v350, %v353
      %vm355 = vcmp.lt.s32.totalorder %v354, 0
      %v356 = vsub.s32 0, %v354
      %v357 = vsel %vm355, %v356, %v354
      %v358 = vclz %v357
      %v359 = vsub.s32 %v358, 2
      %vm360 = vcmp.gt.s32.totalorder 0, %v359
      %v361 = vsel %vm360, 0, %v359
      %v362 = vsub.s32 32, %v361
      %v363 = vshll.u32 %v354, %v361
      %v364 = vshrl.u32 %v346, %v362
      %v365 = vor.u32 %v363, %v364
      %v366 = vsub.s32 4294967266, %v361
      %v367 = vadd.s32 %v366, 127
      %v368 = vshll.u32 %v367, 23
      %v369 = vor.u32 4788187, %v368
      %v370 = vand.u32 2147483647, %v369
      %v372 = vcvt.s32.f32 %v365
      %v373 = vmul.f32 %v372, %v370
      %v374 = vxor.u32 %v373, 2147483648
      %v375 = vsel %vm292, %v374, %v373
      %v376 = vsub.s32 4, %v352
      %v377 = vsel %vm292, %v376, %v352
      %v378 = vsel %vm291, %v286, %v375
      %v379 = vsel %vm291, 0, %v377
      %v380 = vcosq.f32.pop %v378
      %v381 = vsinq.f32.pop %v378
      %vm382 = vweird.f32 %v286
      %v383 = vadd.s32 %v379, 3
      %v384 = vand.u32 %v383, 3
      %vm385 = vcmp.lt.s32.totalorder %v384, 2
      %vm386 = vcmp.eq.s32.totalorder %v384, 0
      %v387 = vxor.u32 %v381, 2147483648
      %v388 = vsel %vm386, %v380, %v387
      %vm389 = vcmp.eq.s32.totalorder %v384, 2
      %v390 = vxor.u32 %v380, 2147483648
      %v391 = vsel %vm389, %v390, %v381
      %v392 = vsel %vm385, %v388, %v391
      %v393 = vsel %vm382, nan, %v392
      %v394 = vand.u32 2147483647, %v287
      %vm395 = vcmp.le.f32.partialorder %v394, 0.7853982
      %vm396 = vcmp.lt.s32.totalorder %v287, 0
      %v397 = vand.u32 %v287, 2139095040
      %v398 = vshrl.u32 %v397, 23
      %v399 = vsub.s32 %v398, 127
      %v400 = vand.u32 2147483647, %v287
      %v401 = vand.u32 %v400, 8388607
      %v402 = vor.u32 %v401, 8388608
      %v403 = vsub.s32 0, %v402
      %v404 = vadd.s32 %v399, 1
      %vm405 = vcmp.gt.s32.totalorder %v404, 0
      %v406 = vsel %vm405, %v404, 0
      %v407 = vshrl.u32 %v406, 5
      %v408 = vand.u32 %v406, 31
      %v409 = vsub.s32 32, %v408
      %v410 = vshrl.u32 683565275, %v409
      %v411 = vshll.u32 683565275, %v408
      %v412 = vshrl.u32 2475754826, %v409
      %v413 = vor.u32 %v411, %v412
      %v414 = vshll.u32 2475754826, %v408
      %v415 = vshrl.u32 2131351028, %v409
      %v416 = vor.u32 %v414, %v415
      %v417 = vshll.u32 2131351028, %v408
      %v418 = vshrl.u32 2102212464, %v409
      %v419 = vor.u32 %v417, %v418
      %v420 = vshll.u32 2102212464, %v408
      %v421 = vshrl.u32 920167782, %v409
      %v422 = vor.u32 %v420, %v421
      %v423 = vshll.u32 920167782, %v408
      %v424 = vshrl.u32 1326507024, %v409
      %v425 = vor.u32 %v423, %v424
      %vm426 = vcmp.lt.s32.totalorder %v407, 1
      %vm427 = vcmp.lt.s32.totalorder %v407, 2
      %vm428 = vcmp.lt.s32.totalorder %v407, 3
      %vm429 = vcmp.lt.s32.totalorder %v407, 4
      %v430 = vsel %vm426, %v410, %v413
      %v431 = vsel %vm429, %v419, 2102212464
      %v432 = vsel %vm428, %v416, %v431
      %v433 = vsel %vm427, %v430, %v432
      %v434 = vsel %vm426, %v413, %v416
      %v435 = vsel %vm429, %v422, 920167782
      %v436 = vsel %vm428, %v419, %v435
      %v437 = vsel %vm427, %v434, %v436
      %v438 = vsel %vm426, %v416, %v419
      %v439 = vsel %vm429, %v425, 1326507024
      %v440 = vsel %vm428, %v422, %v439
      %v441 = vsel %vm427, %v438, %v440
      %v442 = vshll.u32 %v402, 8
      %v443 = vmul.u32.u64.compose %v442, %v441
      %v444 = vextract.low.u32 %v443
      %v445 = vextract.high.u32 %v443
      %v446 = vmul.u32.u64.compose %v442, %v437
      %v447 = vextract.low.u32 %v446
      %v448 = vextract.high.u32 %v446
      %v449 = vmul.u32 %v442, %v433
      %v450 = vadd.s32 %v445, %v447
      %vm451 = vc.u32 %v445, %v447
      %v452 = vadd.s32 %v448, 1
      %v453 = vsel %vm451, %v452, %v448
      %v454 = vadd.s32 %v449, %v453
      %v455 = vadd.s32 %v454, 536870912
      %v456 = vshrl.u32 %v455, 30
      %v457 = vshll.u32 %v456, 30
      %v458 = vsub.s32 %v454, %v457
      %vm459 = vcmp.lt.s32.totalorder %v458, 0
      %v460 = vsub.s32 0, %v458
      %v461 = vsel %vm459, %v460, %v458
      %v462 = vclz %v461
      %v463 = vsub.s32 %v462, 2
      %vm464 = vcmp.gt.s32.totalorder 0, %v463
      %v465 = vsel %vm464, 0, %v463
      %v466 = vsub.s32 32, %v465
      %v467 = vshll.u32 %v458, %v465
      %v468 = vshrl.u32 %v450, %v466
      %v469 = vor.u32 %v467, %v468
      %v470 = vsub.s32 4294967266, %v465
      %v471 = vadd.s32 %v470, 127
      %v472 = vshll.u32 %v471, 23
      %v473 = vor.u32 4788187, %v472
      %v474 = vand.u32 2147483647, %v473
      %v476 = vcvt.s32.f32 %v469
      %v477 = vmul.f32 %v476, %v474
      %v478 = vxor.u32 %v477, 2147483648
      %v479 = vsel %vm396, %v478, %v477
      %v480 = vsub.s32 4, %v456
      %v481 = vsel %vm396, %v480, %v456
      %v482 = vsel %vm395, %v287, %v479
      %v483 = vsel %vm395, 0, %v481
      %v484 = vcosq.f32.pop %v482
      %v485 = vsinq.f32.pop %v482
      %vm486 = vweird.f32 %v287
      %v487 = vadd.s32 %v483, 3
      %v488 = vand.u32 %v487, 3
      %vm489 = vcmp.lt.s32.totalorder %v488, 2
      %vm490 = vcmp.eq.s32.totalorder %v488, 0
      %v491 = vxor.u32 %v485, 2147483648
      %v492 = vsel %vm490, %v484, %v491
      %vm493 = vcmp.eq.s32.totalorder %v488, 2
      %v494 = vxor.u32 %v484, 2147483648
      %v495 = vsel %vm493, %v494, %v485
      %v496 = vsel %vm489, %v492, %v495
      %v497 = vsel %vm486, nan, %v496
      %v498 = vand.u32 2147483647, %v288
      %vm499 = vcmp.le.f32.partialorder %v498, 0.7853982
      %vm500 = vcmp.lt.s32.totalorder %v288, 0
      %v501 = vand.u32 %v288, 2139095040
      %v502 = vshrl.u32 %v501, 23
      %v503 = vsub.s32 %v502, 127
      %v504 = vand.u32 2147483647, %v288
      %v505 = vand.u32 %v504, 8388607
      %v506 = vor.u32 %v505, 8388608
      %v507 = vsub.s32 0, %v506
      %v508 = vadd.s32 %v503, 1
      %vm509 = vcmp.gt.s32.totalorder %v508, 0
      %v510 = vsel %vm509, %v508, 0
      %v511 = vshrl.u32 %v510, 5
      %v512 = vand.u32 %v510, 31
      %v513 = vsub.s32 32, %v512
      %v514 = vshrl.u32 683565275, %v513
      %v515 = vshll.u32 683565275, %v512
      %v516 = vshrl.u32 2475754826, %v513
      %v517 = vor.u32 %v515, %v516
      %v518 = vshll.u32 2475754826, %v512
      %v519 = vshrl.u32 2131351028, %v513
      %v520 = vor.u32 %v518, %v519
      %v521 = vshll.u32 2131351028, %v512
      %v522 = vshrl.u32 2102212464, %v513
      %v523 = vor.u32 %v521, %v522
      %v524 = vshll.u32 2102212464, %v512
      %v525 = vshrl.u32 920167782, %v513
      %v526 = vor.u32 %v524, %v525
      %v527 = vshll.u32 920167782, %v512
      %v528 = vshrl.u32 1326507024, %v513
      %v529 = vor.u32 %v527, %v528
      %vm530 = vcmp.lt.s32.totalorder %v511, 1
      %vm531 = vcmp.lt.s32.totalorder %v511, 2
      %vm532 = vcmp.lt.s32.totalorder %v511, 3
      %vm533 = vcmp.lt.s32.totalorder %v511, 4
      %v534 = vsel %vm530, %v514, %v517
      %v535 = vsel %vm533, %v523, 2102212464
      %v536 = vsel %vm532, %v520, %v535
      %v537 = vsel %vm531, %v534, %v536
      %v538 = vsel %vm530, %v517, %v520
      %v539 = vsel %vm533, %v526, 920167782
      %v540 = vsel %vm532, %v523, %v539
      %v541 = vsel %vm531, %v538, %v540
      %v542 = vsel %vm530, %v520, %v523
      %v543 = vsel %vm533, %v529, 1326507024
      %v544 = vsel %vm532, %v526, %v543
      %v545 = vsel %vm531, %v542, %v544
      %v546 = vshll.u32 %v506, 8
      %v547 = vmul.u32.u64.compose %v546, %v545
      %v548 = vextract.low.u32 %v547
      %v549 = vextract.high.u32 %v547
      %v550 = vmul.u32.u64.compose %v546, %v541
      %v551 = vextract.low.u32 %v550
      %v552 = vextract.high.u32 %v550
      %v553 = vmul.u32 %v546, %v537
      %v554 = vadd.s32 %v549, %v551
      %vm555 = vc.u32 %v549, %v551
      %v556 = vadd.s32 %v552, 1
      %v557 = vsel %vm555, %v556, %v552
      %v558 = vadd.s32 %v553, %v557
      %v559 = vadd.s32 %v558, 536870912
      %v560 = vshrl.u32 %v559, 30
      %v561 = vshll.u32 %v560, 30
      %v562 = vsub.s32 %v558, %v561
      %vm563 = vcmp.lt.s32.totalorder %v562, 0
      %v564 = vsub.s32 0, %v562
      %v565 = vsel %vm563, %v564, %v562
      %v566 = vclz %v565
      %v567 = vsub.s32 %v566, 2
      %vm568 = vcmp.gt.s32.totalorder 0, %v567
      %v569 = vsel %vm568, 0, %v567
      %v570 = vsub.s32 32, %v569
      %v571 = vshll.u32 %v562, %v569
      %v572 = vshrl.u32 %v554, %v570
      %v573 = vor.u32 %v571, %v572
      %v574 = vsub.s32 4294967266, %v569
      %v575 = vadd.s32 %v574, 127
      %v576 = vshll.u32 %v575, 23
      %v577 = vor.u32 4788187, %v576
      %v578 = vand.u32 2147483647, %v577
      %v580 = vcvt.s32.f32 %v573
      %v581 = vmul.f32 %v580, %v578
      %v582 = vxor.u32 %v581, 2147483648
      %v583 = vsel %vm500, %v582, %v581
      %v584 = vsub.s32 4, %v560
      %v585 = vsel %vm500, %v584, %v560
      %v586 = vsel %vm499, %v288, %v583
      %v587 = vsel %vm499, 0, %v585
      %v588 = vcosq.f32.pop %v586
      %v589 = vsinq.f32.pop %v586
      %vm590 = vweird.f32 %v288
      %v591 = vadd.s32 %v587, 3
      %v592 = vand.u32 %v591, 3
      %vm593 = vcmp.lt.s32.totalorder %v592, 2
      %vm594 = vcmp.eq.s32.totalorder %v592, 0
      %v595 = vxor.u32 %v589, 2147483648
      %v596 = vsel %vm594, %v588, %v595
      %vm597 = vcmp.eq.s32.totalorder %v592, 2
      %v598 = vxor.u32 %v588, 2147483648
      %v599 = vsel %vm597, %v598, %v589
      %v600 = vsel %vm593, %v596, %v599
      %v601 = vsel %vm590, nan, %v600
      %v602 = vand.u32 2147483647, %v289
      %vm603 = vcmp.le.f32.partialorder %v602, 0.7853982
      %vm604 = vcmp.lt.s32.totalorder %v289, 0
      %v605 = vand.u32 %v289, 2139095040
      %v606 = vshrl.u32 %v605, 23
      %v607 = vsub.s32 %v606, 127
      %v608 = vand.u32 2147483647, %v289
      %v609 = vand.u32 %v608, 8388607
      %v610 = vor.u32 %v609, 8388608
      %v611 = vsub.s32 0, %v610
      %v612 = vadd.s32 %v607, 1
      %vm613 = vcmp.gt.s32.totalorder %v612, 0
      %v614 = vsel %vm613, %v612, 0
      %v615 = vshrl.u32 %v614, 5
      %v616 = vand.u32 %v614, 31
      %v617 = vsub.s32 32, %v616
      %v618 = vshrl.u32 683565275, %v617
      %v619 = vshll.u32 683565275, %v616
      %v620 = vshrl.u32 2475754826, %v617
      %v621 = vor.u32 %v619, %v620
      %v622 = vshll.u32 2475754826, %v616
      %v623 = vshrl.u32 2131351028, %v617
      %v624 = vor.u32 %v622, %v623
      %v625 = vshll.u32 2131351028, %v616
      %v626 = vshrl.u32 2102212464, %v617
      %v627 = vor.u32 %v625, %v626
      %v628 = vshll.u32 2102212464, %v616
      %v629 = vshrl.u32 920167782, %v617
      %v630 = vor.u32 %v628, %v629
      %v631 = vshll.u32 920167782, %v616
      %v632 = vshrl.u32 1326507024, %v617
      %v633 = vor.u32 %v631, %v632
      %vm634 = vcmp.lt.s32.totalorder %v615, 1
      %vm635 = vcmp.lt.s32.totalorder %v615, 2
      %vm636 = vcmp.lt.s32.totalorder %v615, 3
      %vm637 = vcmp.lt.s32.totalorder %v615, 4
      %v638 = vsel %vm634, %v618, %v621
      %v639 = vsel %vm637, %v627, 2102212464
      %v640 = vsel %vm636, %v624, %v639
      %v641 = vsel %vm635, %v638, %v640
      %v642 = vsel %vm634, %v621, %v624
      %v643 = vsel %vm637, %v630, 920167782
      %v644 = vsel %vm636, %v627, %v643
      %v645 = vsel %vm635, %v642, %v644
      %v646 = vsel %vm634, %v624, %v627
      %v647 = vsel %vm637, %v633, 1326507024
      %v648 = vsel %vm636, %v630, %v647
      %v649 = vsel %vm635, %v646, %v648
      %v650 = vshll.u32 %v610, 8
      %v651 = vmul.u32.u64.compose %v650, %v649
      %v652 = vextract.low.u32 %v651
      %v653 = vextract.high.u32 %v651
      %v654 = vmul.u32.u64.compose %v650, %v645
      %v655 = vextract.low.u32 %v654
      %v656 = vextract.high.u32 %v654
      %v657 = vmul.u32 %v650, %v641
      %v658 = vadd.s32 %v653, %v655
      %vm659 = vc.u32 %v653, %v655
      %v660 = vadd.s32 %v656, 1
      %v661 = vsel %vm659, %v660, %v656
      %v662 = vadd.s32 %v657, %v661
      %v663 = vadd.s32 %v662, 536870912
      %v664 = vshrl.u32 %v663, 30
      %v665 = vshll.u32 %v664, 30
      %v666 = vsub.s32 %v662, %v665
      %vm667 = vcmp.lt.s32.totalorder %v666, 0
      %v668 = vsub.s32 0, %v666
      %v669 = vsel %vm667, %v668, %v666
      %v670 = vclz %v669
      %v671 = vsub.s32 %v670, 2
      %vm672 = vcmp.gt.s32.totalorder 0, %v671
      %v673 = vsel %vm672, 0, %v671
      %v674 = vsub.s32 32, %v673
      %v675 = vshll.u32 %v666, %v673
      %v676 = vshrl.u32 %v658, %v674
      %v677 = vor.u32 %v675, %v676
      %v678 = vsub.s32 4294967266, %v673
      %v679 = vadd.s32 %v678, 127
      %v680 = vshll.u32 %v679, 23
      %v681 = vor.u32 4788187, %v680
      %v682 = vand.u32 2147483647, %v681
      %v684 = vcvt.s32.f32 %v677
      %v685 = vmul.f32 %v684, %v682
      %v686 = vxor.u32 %v685, 2147483648
      %v687 = vsel %vm604, %v686, %v685
      %v688 = vsub.s32 4, %v664
      %v689 = vsel %vm604, %v688, %v664
      %v690 = vsel %vm603, %v289, %v687
      %v691 = vsel %vm603, 0, %v689
      %v692 = vcosq.f32.pop %v690
      %v693 = vsinq.f32.pop %v690
      %vm694 = vweird.f32 %v289
      %v695 = vadd.s32 %v691, 3
      %v696 = vand.u32 %v695, 3
      %vm697 = vcmp.lt.s32.totalorder %v696, 2
      %vm698 = vcmp.eq.s32.totalorder %v696, 0
      %v699 = vxor.u32 %v693, 2147483648
      %v700 = vsel %vm698, %v692, %v699
      %vm701 = vcmp.eq.s32.totalorder %v696, 2
      %v702 = vxor.u32 %v692, 2147483648
      %v703 = vsel %vm701, %v702, %v693
      %v704 = vsel %vm697, %v700, %v703
      %v705 = vsel %vm694, nan, %v704
      %v706 = vpack.c.bf16 %v497, %v393
      %v707 = vpack.c.bf16 %v705, %v601
      %v708 = vand.u32 2147483647, %v286
      %vm709 = vcmp.le.f32.partialorder %v708, 0.7853982
      %vm710 = vcmp.lt.s32.totalorder %v286, 0
      %v711 = vand.u32 %v286, 2139095040
      %v712 = vshrl.u32 %v711, 23
      %v713 = vsub.s32 %v712, 127
      %v714 = vand.u32 2147483647, %v286
      %v715 = vand.u32 %v714, 8388607
      %v716 = vor.u32 %v715, 8388608
      %v717 = vsub.s32 0, %v716
      %v718 = vadd.s32 %v713, 1
      %vm719 = vcmp.gt.s32.totalorder %v718, 0
      %v720 = vsel %vm719, %v718, 0
      %v721 = vshrl.u32 %v720, 5
      %v722 = vand.u32 %v720, 31
      %v723 = vsub.s32 32, %v722
      %v724 = vshrl.u32 683565275, %v723
      %v725 = vshll.u32 683565275, %v722
      %v726 = vshrl.u32 2475754826, %v723
      %v727 = vor.u32 %v725, %v726
      %v728 = vshll.u32 2475754826, %v722
      %v729 = vshrl.u32 2131351028, %v723
      %v730 = vor.u32 %v728, %v729
      %v731 = vshll.u32 2131351028, %v722
      %v732 = vshrl.u32 2102212464, %v723
      %v733 = vor.u32 %v731, %v732
      %v734 = vshll.u32 2102212464, %v722
      %v735 = vshrl.u32 920167782, %v723
      %v736 = vor.u32 %v734, %v735
      %v737 = vshll.u32 920167782, %v722
      %v738 = vshrl.u32 1326507024, %v723
      %v739 = vor.u32 %v737, %v738
      %vm740 = vcmp.lt.s32.totalorder %v721, 1
      %vm741 = vcmp.lt.s32.totalorder %v721, 2
      %vm742 = vcmp.lt.s32.totalorder %v721, 3
      %vm743 = vcmp.lt.s32.totalorder %v721, 4
      %v744 = vsel %vm740, %v724, %v727
      %v745 = vsel %vm743, %v733, 2102212464
      %v746 = vsel %vm742, %v730, %v745
      %v747 = vsel %vm741, %v744, %v746
      %v748 = vsel %vm740, %v727, %v730
      %v749 = vsel %vm743, %v736, 920167782
      %v750 = vsel %vm742, %v733, %v749
      %v751 = vsel %vm741, %v748, %v750
      %v752 = vsel %vm740, %v730, %v733
      %v753 = vsel %vm743, %v739, 1326507024
      %v754 = vsel %vm742, %v736, %v753
      %v755 = vsel %vm741, %v752, %v754
      %v756 = vshll.u32 %v716, 8
      %v757 = vmul.u32.u64.compose %v756, %v755
      %v758 = vextract.low.u32 %v757
      %v759 = vextract.high.u32 %v757
      %v760 = vmul.u32.u64.compose %v756, %v751
      %v761 = vextract.low.u32 %v760
      %v762 = vextract.high.u32 %v760
      %v763 = vmul.u32 %v756, %v747
      %v764 = vadd.s32 %v759, %v761
      %vm765 = vc.u32 %v759, %v761
      %v766 = vadd.s32 %v762, 1
      %v767 = vsel %vm765, %v766, %v762
      %v768 = vadd.s32 %v763, %v767
      %v769 = vadd.s32 %v768, 536870912
      %v770 = vshrl.u32 %v769, 30
      %v771 = vshll.u32 %v770, 30
      %v772 = vsub.s32 %v768, %v771
      %vm773 = vcmp.lt.s32.totalorder %v772, 0
      %v774 = vsub.s32 0, %v772
      %v775 = vsel %vm773, %v774, %v772
      %v776 = vclz %v775
      %v777 = vsub.s32 %v776, 2
      %vm778 = vcmp.gt.s32.totalorder 0, %v777
      %v779 = vsel %vm778, 0, %v777
      %v780 = vsub.s32 32, %v779
      %v781 = vshll.u32 %v772, %v779
      %v782 = vshrl.u32 %v764, %v780
      %v783 = vor.u32 %v781, %v782
      %v784 = vsub.s32 4294967266, %v779
      %v785 = vadd.s32 %v784, 127
      %v786 = vshll.u32 %v785, 23
      %v787 = vor.u32 4788187, %v786
      %v788 = vand.u32 2147483647, %v787
      %v790 = vcvt.s32.f32 %v783
      %v791 = vmul.f32 %v790, %v788
      %v792 = vxor.u32 %v791, 2147483648
      %v793 = vsel %vm710, %v792, %v791
      %v794 = vsub.s32 4, %v770
      %v795 = vsel %vm710, %v794, %v770
      %v796 = vsel %vm709, %v286, %v793
      %v797 = vsel %vm709, 0, %v795
      %v798 = vcosq.f32.pop %v796
      %v799 = vsinq.f32.pop %v796
      %vm800 = vweird.f32 %v286
      %v801 = vand.u32 %v797, 3
      %vm802 = vcmp.lt.s32.totalorder %v801, 2
      %vm803 = vcmp.eq.s32.totalorder %v801, 0
      %v804 = vxor.u32 %v799, 2147483648
      %v805 = vsel %vm803, %v798, %v804
      %vm806 = vcmp.eq.s32.totalorder %v801, 2
      %v807 = vxor.u32 %v798, 2147483648
      %v808 = vsel %vm806, %v807, %v799
      %v809 = vsel %vm802, %v805, %v808
      %v810 = vsel %vm800, nan, %v809
      %v811 = vand.u32 2147483647, %v287
      %vm812 = vcmp.le.f32.partialorder %v811, 0.7853982
      %vm813 = vcmp.lt.s32.totalorder %v287, 0
      %v814 = vand.u32 %v287, 2139095040
      %v815 = vshrl.u32 %v814, 23
      %v816 = vsub.s32 %v815, 127
      %v817 = vand.u32 2147483647, %v287
      %v818 = vand.u32 %v817, 8388607
      %v819 = vor.u32 %v818, 8388608
      %v820 = vsub.s32 0, %v819
      %v821 = vadd.s32 %v816, 1
      %vm822 = vcmp.gt.s32.totalorder %v821, 0
      %v823 = vsel %vm822, %v821, 0
      %v824 = vshrl.u32 %v823, 5
      %v825 = vand.u32 %v823, 31
      %v826 = vsub.s32 32, %v825
      %v827 = vshrl.u32 683565275, %v826
      %v828 = vshll.u32 683565275, %v825
      %v829 = vshrl.u32 2475754826, %v826
      %v830 = vor.u32 %v828, %v829
      %v831 = vshll.u32 2475754826, %v825
      %v832 = vshrl.u32 2131351028, %v826
      %v833 = vor.u32 %v831, %v832
      %v834 = vshll.u32 2131351028, %v825
      %v835 = vshrl.u32 2102212464, %v826
      %v836 = vor.u32 %v834, %v835
      %v837 = vshll.u32 2102212464, %v825
      %v838 = vshrl.u32 920167782, %v826
      %v839 = vor.u32 %v837, %v838
      %v840 = vshll.u32 920167782, %v825
      %v841 = vshrl.u32 1326507024, %v826
      %v842 = vor.u32 %v840, %v841
      %vm843 = vcmp.lt.s32.totalorder %v824, 1
      %vm844 = vcmp.lt.s32.totalorder %v824, 2
      %vm845 = vcmp.lt.s32.totalorder %v824, 3
      %vm846 = vcmp.lt.s32.totalorder %v824, 4
      %v847 = vsel %vm843, %v827, %v830
      %v848 = vsel %vm846, %v836, 2102212464
      %v849 = vsel %vm845, %v833, %v848
      %v850 = vsel %vm844, %v847, %v849
      %v851 = vsel %vm843, %v830, %v833
      %v852 = vsel %vm846, %v839, 920167782
      %v853 = vsel %vm845, %v836, %v852
      %v854 = vsel %vm844, %v851, %v853
      %v855 = vsel %vm843, %v833, %v836
      %v856 = vsel %vm846, %v842, 1326507024
      %v857 = vsel %vm845, %v839, %v856
      %v858 = vsel %vm844, %v855, %v857
      %v859 = vshll.u32 %v819, 8
      %v860 = vmul.u32.u64.compose %v859, %v858
      %v861 = vextract.low.u32 %v860
      %v862 = vextract.high.u32 %v860
      %v863 = vmul.u32.u64.compose %v859, %v854
      %v864 = vextract.low.u32 %v863
      %v865 = vextract.high.u32 %v863
      %v866 = vmul.u32 %v859, %v850
      %v867 = vadd.s32 %v862, %v864
      %vm868 = vc.u32 %v862, %v864
      %v869 = vadd.s32 %v865, 1
      %v870 = vsel %vm868, %v869, %v865
      %v871 = vadd.s32 %v866, %v870
      %v872 = vadd.s32 %v871, 536870912
      %v873 = vshrl.u32 %v872, 30
      %v874 = vshll.u32 %v873, 30
      %v875 = vsub.s32 %v871, %v874
      %vm876 = vcmp.lt.s32.totalorder %v875, 0
      %v877 = vsub.s32 0, %v875
      %v878 = vsel %vm876, %v877, %v875
      %v879 = vclz %v878
      %v880 = vsub.s32 %v879, 2
      %vm881 = vcmp.gt.s32.totalorder 0, %v880
      %v882 = vsel %vm881, 0, %v880
      %v883 = vsub.s32 32, %v882
      %v884 = vshll.u32 %v875, %v882
      %v885 = vshrl.u32 %v867, %v883
      %v886 = vor.u32 %v884, %v885
      %v887 = vsub.s32 4294967266, %v882
      %v888 = vadd.s32 %v887, 127
      %v889 = vshll.u32 %v888, 23
      %v890 = vor.u32 4788187, %v889
      %v891 = vand.u32 2147483647, %v890
      %v893 = vcvt.s32.f32 %v886
      %v894 = vmul.f32 %v893, %v891
      %v895 = vxor.u32 %v894, 2147483648
      %v896 = vsel %vm813, %v895, %v894
      %v897 = vsub.s32 4, %v873
      %v898 = vsel %vm813, %v897, %v873
      %v899 = vsel %vm812, %v287, %v896
      %v900 = vsel %vm812, 0, %v898
      %v901 = vcosq.f32.pop %v899
      %v902 = vsinq.f32.pop %v899
      %vm903 = vweird.f32 %v287
      %v904 = vand.u32 %v900, 3
      %vm905 = vcmp.lt.s32.totalorder %v904, 2
      %vm906 = vcmp.eq.s32.totalorder %v904, 0
      %v907 = vxor.u32 %v902, 2147483648
      %v908 = vsel %vm906, %v901, %v907
      %vm909 = vcmp.eq.s32.totalorder %v904, 2
      %v910 = vxor.u32 %v901, 2147483648
      %v911 = vsel %vm909, %v910, %v902
      %v912 = vsel %vm905, %v908, %v911
      %v913 = vsel %vm903, nan, %v912
      %v914 = vand.u32 2147483647, %v288
      %vm915 = vcmp.le.f32.partialorder %v914, 0.7853982
      %vm916 = vcmp.lt.s32.totalorder %v288, 0
      %v917 = vand.u32 %v288, 2139095040
      %v918 = vshrl.u32 %v917, 23
      %v919 = vsub.s32 %v918, 127
      %v920 = vand.u32 2147483647, %v288
      %v921 = vand.u32 %v920, 8388607
      %v922 = vor.u32 %v921, 8388608
      %v923 = vsub.s32 0, %v922
      %v924 = vadd.s32 %v919, 1
      %vm925 = vcmp.gt.s32.totalorder %v924, 0
      %v926 = vsel %vm925, %v924, 0
      %v927 = vshrl.u32 %v926, 5
      %v928 = vand.u32 %v926, 31
      %v929 = vsub.s32 32, %v928
      %v930 = vshrl.u32 683565275, %v929
      %v931 = vshll.u32 683565275, %v928
      %v932 = vshrl.u32 2475754826, %v929
      %v933 = vor.u32 %v931, %v932
      %v934 = vshll.u32 2475754826, %v928
      %v935 = vshrl.u32 2131351028, %v929
      %v936 = vor.u32 %v934, %v935
      %v937 = vshll.u32 2131351028, %v928
      %v938 = vshrl.u32 2102212464, %v929
      %v939 = vor.u32 %v937, %v938
      %v940 = vshll.u32 2102212464, %v928
      %v941 = vshrl.u32 920167782, %v929
      %v942 = vor.u32 %v940, %v941
      %v943 = vshll.u32 920167782, %v928
      %v944 = vshrl.u32 1326507024, %v929
      %v945 = vor.u32 %v943, %v944
      %vm946 = vcmp.lt.s32.totalorder %v927, 1
      %vm947 = vcmp.lt.s32.totalorder %v927, 2
      %vm948 = vcmp.lt.s32.totalorder %v927, 3
      %vm949 = vcmp.lt.s32.totalorder %v927, 4
      %v950 = vsel %vm946, %v930, %v933
      %v951 = vsel %vm949, %v939, 2102212464
      %v952 = vsel %vm948, %v936, %v951
      %v953 = vsel %vm947, %v950, %v952
      %v954 = vsel %vm946, %v933, %v936
      %v955 = vsel %vm949, %v942, 920167782
      %v956 = vsel %vm948, %v939, %v955
      %v957 = vsel %vm947, %v954, %v956
      %v958 = vsel %vm946, %v936, %v939
      %v959 = vsel %vm949, %v945, 1326507024
      %v960 = vsel %vm948, %v942, %v959
      %v961 = vsel %vm947, %v958, %v960
      %v962 = vshll.u32 %v922, 8
      %v963 = vmul.u32.u64.compose %v962, %v961
      %v964 = vextract.low.u32 %v963
      %v965 = vextract.high.u32 %v963
      %v966 = vmul.u32.u64.compose %v962, %v957
      %v967 = vextract.low.u32 %v966
      %v968 = vextract.high.u32 %v966
      %v969 = vmul.u32 %v962, %v953
      %v970 = vadd.s32 %v965, %v967
      %vm971 = vc.u32 %v965, %v967
      %v972 = vadd.s32 %v968, 1
      %v973 = vsel %vm971, %v972, %v968
      %v974 = vadd.s32 %v969, %v973
      %v975 = vadd.s32 %v974, 536870912
      %v976 = vshrl.u32 %v975, 30
      %v977 = vshll.u32 %v976, 30
      %v978 = vsub.s32 %v974, %v977
      %vm979 = vcmp.lt.s32.totalorder %v978, 0
      %v980 = vsub.s32 0, %v978
      %v981 = vsel %vm979, %v980, %v978
      %v982 = vclz %v981
      %v983 = vsub.s32 %v982, 2
      %vm984 = vcmp.gt.s32.totalorder 0, %v983
      %v985 = vsel %vm984, 0, %v983
      %v986 = vsub.s32 32, %v985
      %v987 = vshll.u32 %v978, %v985
      %v988 = vshrl.u32 %v970, %v986
      %v989 = vor.u32 %v987, %v988
      %v990 = vsub.s32 4294967266, %v985
      %v991 = vadd.s32 %v990, 127
      %v992 = vshll.u32 %v991, 23
      %v993 = vor.u32 4788187, %v992
      %v994 = vand.u32 2147483647, %v993
      %v996 = vcvt.s32.f32 %v989
      %v997 = vmul.f32 %v996, %v994
      %v998 = vxor.u32 %v997, 2147483648
      %v999 = vsel %vm916, %v998, %v997
      %v1000 = vsub.s32 4, %v976
      %v1001 = vsel %vm916, %v1000, %v976
      %v1002 = vsel %vm915, %v288, %v999
      %v1003 = vsel %vm915, 0, %v1001
      %v1004 = vcosq.f32.pop %v1002
      %v1005 = vsinq.f32.pop %v1002
      %vm1006 = vweird.f32 %v288
      %v1007 = vand.u32 %v1003, 3
      %vm1008 = vcmp.lt.s32.totalorder %v1007, 2
      %vm1009 = vcmp.eq.s32.totalorder %v1007, 0
      %v1010 = vxor.u32 %v1005, 2147483648
      %v1011 = vsel %vm1009, %v1004, %v1010
      %vm1012 = vcmp.eq.s32.totalorder %v1007, 2
      %v1013 = vxor.u32 %v1004, 2147483648
      %v1014 = vsel %vm1012, %v1013, %v1005
      %v1015 = vsel %vm1008, %v1011, %v1014
      %v1016 = vsel %vm1006, nan, %v1015
      %v1017 = vand.u32 2147483647, %v289
      %vm1018 = vcmp.le.f32.partialorder %v1017, 0.7853982
      %vm1019 = vcmp.lt.s32.totalorder %v289, 0
      %v1020 = vand.u32 %v289, 2139095040
      %v1021 = vshrl.u32 %v1020, 23
      %v1022 = vsub.s32 %v1021, 127
      %v1023 = vand.u32 2147483647, %v289
      %v1024 = vand.u32 %v1023, 8388607
      %v1025 = vor.u32 %v1024, 8388608
      %v1026 = vsub.s32 0, %v1025
      %v1027 = vadd.s32 %v1022, 1
      %vm1028 = vcmp.gt.s32.totalorder %v1027, 0
      %v1029 = vsel %vm1028, %v1027, 0
      %v1030 = vshrl.u32 %v1029, 5
      %v1031 = vand.u32 %v1029, 31
      %v1032 = vsub.s32 32, %v1031
      %v1033 = vshrl.u32 683565275, %v1032
      %v1034 = vshll.u32 683565275, %v1031
      %v1035 = vshrl.u32 2475754826, %v1032
      %v1036 = vor.u32 %v1034, %v1035
      %v1037 = vshll.u32 2475754826, %v1031
      %v1038 = vshrl.u32 2131351028, %v1032
      %v1039 = vor.u32 %v1037, %v1038
      %v1040 = vshll.u32 2131351028, %v1031
      %v1041 = vshrl.u32 2102212464, %v1032
      %v1042 = vor.u32 %v1040, %v1041
      %v1043 = vshll.u32 2102212464, %v1031
      %v1044 = vshrl.u32 920167782, %v1032
      %v1045 = vor.u32 %v1043, %v1044
      %v1046 = vshll.u32 920167782, %v1031
      %v1047 = vshrl.u32 1326507024, %v1032
      %v1048 = vor.u32 %v1046, %v1047
      %vm1049 = vcmp.lt.s32.totalorder %v1030, 1
      %vm1050 = vcmp.lt.s32.totalorder %v1030, 2
      %vm1051 = vcmp.lt.s32.totalorder %v1030, 3
      %vm1052 = vcmp.lt.s32.totalorder %v1030, 4
      %v1053 = vsel %vm1049, %v1033, %v1036
      %v1054 = vsel %vm1052, %v1042, 2102212464
      %v1055 = vsel %vm1051, %v1039, %v1054
      %v1056 = vsel %vm1050, %v1053, %v1055
      %v1057 = vsel %vm1049, %v1036, %v1039
      %v1058 = vsel %vm1052, %v1045, 920167782
      %v1059 = vsel %vm1051, %v1042, %v1058
      %v1060 = vsel %vm1050, %v1057, %v1059
      %v1061 = vsel %vm1049, %v1039, %v1042
      %v1062 = vsel %vm1052, %v1048, 1326507024
      %v1063 = vsel %vm1051, %v1045, %v1062
      %v1064 = vsel %vm1050, %v1061, %v1063
      %v1065 = vshll.u32 %v1025, 8
      %v1066 = vmul.u32.u64.compose %v1065, %v1064
      %v1067 = vextract.low.u32 %v1066
      %v1068 = vextract.high.u32 %v1066
      %v1069 = vmul.u32.u64.compose %v1065, %v1060
      %v1070 = vextract.low.u32 %v1069
      %v1071 = vextract.high.u32 %v1069
      %v1072 = vmul.u32 %v1065, %v1056
      %v1073 = vadd.s32 %v1068, %v1070
      %vm1074 = vc.u32 %v1068, %v1070
      %v1075 = vadd.s32 %v1071, 1
      %v1076 = vsel %vm1074, %v1075, %v1071
      %v1077 = vadd.s32 %v1072, %v1076
      %v1078 = vadd.s32 %v1077, 536870912
      %v1079 = vshrl.u32 %v1078, 30
      %v1080 = vshll.u32 %v1079, 30
      %v1081 = vsub.s32 %v1077, %v1080
      %vm1082 = vcmp.lt.s32.totalorder %v1081, 0
      %v1083 = vsub.s32 0, %v1081
      %v1084 = vsel %vm1082, %v1083, %v1081
      %v1085 = vclz %v1084
      %v1086 = vsub.s32 %v1085, 2
      %vm1087 = vcmp.gt.s32.totalorder 0, %v1086
      %v1088 = vsel %vm1087, 0, %v1086
      %v1089 = vsub.s32 32, %v1088
      %v1090 = vshll.u32 %v1081, %v1088
      %v1091 = vshrl.u32 %v1073, %v1089
      %v1092 = vor.u32 %v1090, %v1091
      %v1093 = vsub.s32 4294967266, %v1088
      %v1094 = vadd.s32 %v1093, 127
      %v1095 = vshll.u32 %v1094, 23
      %v1096 = vor.u32 4788187, %v1095
      %v1097 = vand.u32 2147483647, %v1096
      %v1099 = vcvt.s32.f32 %v1092
      %v1100 = vmul.f32 %v1099, %v1097
      %v1101 = vxor.u32 %v1100, 2147483648
      %v1102 = vsel %vm1019, %v1101, %v1100
      %v1103 = vsub.s32 4, %v1079
      %v1104 = vsel %vm1019, %v1103, %v1079
      %v1105 = vsel %vm1018, %v289, %v1102
      %v1106 = vsel %vm1018, 0, %v1104
      %v1107 = vcosq.f32.pop %v1105
      %v1108 = vsinq.f32.pop %v1105
      %vm1109 = vweird.f32 %v289
      %v1110 = vand.u32 %v1106, 3
      %vm1111 = vcmp.lt.s32.totalorder %v1110, 2
      %vm1112 = vcmp.eq.s32.totalorder %v1110, 0
      %v1113 = vxor.u32 %v1108, 2147483648
      %v1114 = vsel %vm1112, %v1107, %v1113
      %vm1115 = vcmp.eq.s32.totalorder %v1110, 2
      %v1116 = vxor.u32 %v1107, 2147483648
      %v1117 = vsel %vm1115, %v1116, %v1108
      %v1118 = vsel %vm1111, %v1114, %v1117
      %v1119 = vsel %vm1109, nan, %v1118
      %v1120 = vpack.c.bf16 %v913, %v810
      %v1121 = vpack.c.bf16 %v1119, %v1016
      %v1122 = vld [vmem:[%s2] sm:$0xf]
      %v1123 = vld [vmem:[%s2 + $0x4] sm:$0xf]
      %v1124 = vld [vmem:[%s3] sm:$0xf]
      %v1125 = vld [vmem:[%s3 + $0x4] sm:$0xf]
      %v1128 = vunpack.c.l.b16 %v1124
      %v1129 = vunpack.c.l.b16 %v1125
      %v1130 = vpack.c.b16 %v1129, %v1128
      %vm1132 = vcmask 130048
      %v1134 = vsel %vm1132, %v1120, 0
      %v1137 = vsel %vm1132, %v1121, 0
      %1139 = vmatprep.subr.bf16.mxu0 0
      %1140 = vmatpush1.bf16.msra.mxu0 %v1130
      %1141 = vmatprep.subr.bf16.mxu0 0
      %1142 = vmatpush1.bf16.msra.mxu0 0
      %1143 = vmatprep.subr.bf16.mxu0 0
      %1144 = vmatpush1.bf16.msra.mxu0 0
      %1145 = vmatprep.subr.bf16.mxu0 0
      %1146 = vmatpush1.bf16.msra.mxu0 0
      %1147 = vmatprep.subr.bf16.mxu0 0
      %1148 = vmatpush1.bf16.msra.mxu0 0
      %1149 = vmatprep.subr.bf16.mxu0 0
      %1150 = vmatpush1.bf16.msra.mxu0 0
      %1151 = vmatprep.subr.bf16.mxu0 0
      %1152 = vmatpush1.bf16.msra.mxu0 0
      %1153 = vmatprep.subr.bf16.mxu0 0
      %1154 = vmatpush1.bf16.msra.mxu0 0
      %1155 = vmatprep.subr.bf16.mxu0 0
      %1156 = vmatpush1.bf16.msra.mxu0 0
      %1157 = vmatprep.subr.bf16.mxu0 0
      %1158 = vmatpush1.bf16.msra.mxu0 0
      %1159 = vmatprep.subr.bf16.mxu0 0
      %1160 = vmatpush1.bf16.msra.mxu0 0
      %1161 = vmatprep.subr.bf16.mxu0 0
      %1162 = vmatpush1.bf16.msra.mxu0 0
      %1163 = vmatprep.subr.bf16.mxu0 0
      %1164 = vmatpush1.bf16.msra.mxu0 0
      %1165 = vmatprep.subr.bf16.mxu0 0
      %1166 = vmatpush1.bf16.msra.mxu0 0
      %1167 = vmatprep.subr.bf16.mxu0 0
      %1168 = vmatpush1.bf16.msra.mxu0 0
      %1169 = vmatprep.subr.bf16.mxu0 0
      %1170 = vmatpush1.bf16.msra.mxu0 0
      %1171 = vmatprep.mubr.bf16.mxu0 0
      %1172 = vmatmul.mubr.bf16.gmra.mrb[0].mxu0 %v1134
      %v1173 = vpop.f32.mrb[0].mxu0
      %v1174 = vadd.f32 0.0, %v1173
      %v1175 = vpop.f32.mrb[0].mxu0
      %v1176 = vpop.f32.mrb[0].mxu0
      %v1177 = vadd.f32 0.0, %v1176
      %v1178 = vpop.f32.mrb[0].mxu0
      %1179 = vmatprep.mubr.bf16.mxu0 0
      %1180 = vmatmul.mubr.bf16.gmra.mrb[0].mxu0 %v1137
      %v1181 = vpop.f32.mrb[0].mxu0
      %v1182 = vadd.f32 0.0, %v1181
      %v1183 = vpop.f32.mrb[0].mxu0
      %v1184 = vpop.f32.mrb[0].mxu0
      %v1185 = vadd.f32 0.0, %v1184
      %v1186 = vpop.f32.mrb[0].mxu0
      %1187 = vdwg.mxu0
      %v1190 = vunpack.c.l.b16 %v1122
      %v1191 = vunpack.c.l.b16 %v1123
      %v1192 = vpack.c.b16 %v1191, %v1190
      %v1195 = vsel %vm1132, %v706, 0
      %v1198 = vsel %vm1132, %v707, 0
      %1200 = vmatprep.subr.bf16.mxu0 0
      %1201 = vmatpush1.bf16.msra.mxu0 %v1192
      %1202 = vmatprep.subr.bf16.mxu0 0
      %1203 = vmatpush1.bf16.msra.mxu0 0
      %1204 = vmatprep.subr.bf16.mxu0 0
      %1205 = vmatpush1.bf16.msra.mxu0 0
      %1206 = vmatprep.subr.bf16.mxu0 0
      %1207 = vmatpush1.bf16.msra.mxu0 0
      %1208 = vmatprep.subr.bf16.mxu0 0
      %1209 = vmatpush1.bf16.msra.mxu0 0
      %1210 = vmatprep.subr.bf16.mxu0 0
      %1211 = vmatpush1.bf16.msra.mxu0 0
      %1212 = vmatprep.subr.bf16.mxu0 0
      %1213 = vmatpush1.bf16.msra.mxu0 0
      %1214 = vmatprep.subr.bf16.mxu0 0
      %1215 = vmatpush1.bf16.msra.mxu0 0
      %1216 = vmatprep.subr.bf16.mxu0 0
      %1217 = vmatpush1.bf16.msra.mxu0 0
      %1218 = vmatprep.subr.bf16.mxu0 0
      %1219 = vmatpush1.bf16.msra.mxu0 0
      %1220 = vmatprep.subr.bf16.mxu0 0
      %1221 = vmatpush1.bf16.msra.mxu0 0
      %1222 = vmatprep.subr.bf16.mxu0 0
      %1223 = vmatpush1.bf16.msra.mxu0 0
      %1224 = vmatprep.subr.bf16.mxu0 0
      %1225 = vmatpush1.bf16.msra.mxu0 0
      %1226 = vmatprep.subr.bf16.mxu0 0
      %1227 = vmatpush1.bf16.msra.mxu0 0
      %1228 = vmatprep.subr.bf16.mxu0 0
      %1229 = vmatpush1.bf16.msra.mxu0 0
      %1230 = vmatprep.subr.bf16.mxu0 0
      %1231 = vmatpush1.bf16.msra.mxu0 0
      %1232 = vmatprep.mubr.bf16.mxu0 0
      %1233 = vmatmul.mubr.bf16.gmra.mrb[0].mxu0 %v1195
      %v1234 = vpop.f32.mrb[0].mxu0
      %v1235 = vadd.f32 %v1174, %v1234
      %v1236 = vpop.f32.mrb[0].mxu0
      %v1237 = vpop.f32.mrb[0].mxu0
      %v1238 = vadd.f32 %v1177, %v1237
      %v1239 = vpop.f32.mrb[0].mxu0
      %1240 = vmatprep.mubr.bf16.mxu0 0
      %1241 = vmatmul.mubr.bf16.gmra.mrb[0].mxu0 %v1198
      %v1242 = vpop.f32.mrb[0].mxu0
      %v1243 = vadd.f32 %v1182, %v1242
      %v1244 = vpop.f32.mrb[0].mxu0
      %v1245 = vpop.f32.mrb[0].mxu0
      %v1246 = vadd.f32 %v1185, %v1245
      %v1247 = vpop.f32.mrb[0].mxu0
      %1248 = vdwg.mxu0
      %v1249 = vld [vmem:[%s4] sm:$0x1]
      %v1251 = vlaneseq
      %v1252 = vshrl.u32 %v1251, 7
      %v1253 = vsub.s32 0, %v1252
      %v1254 = vrot.slane %v1249, %v1253
      %v1256 = vadd.f32 %v1235, %v1254
      %v1257 = vadd.f32 %v1238, %v1254
      %v1258 = vadd.f32 %v1243, %v1254
      %v1259 = vadd.f32 %v1246, %v1254
      %vm1260 = vcmask 261120
      %1261 = vst.msk [vmem:[%s226] sm:$0xff] %vm1260, %v1256
      %1262 = vst.msk [vmem:[%s226 + $0x8] sm:$0xff] %vm1260, %v1257
      %1263 = vst.msk [vmem:[%s226 + $0x10] sm:$0xff] %vm1260, %v1258
      %1264 = vst.msk [vmem:[%s226 + $0x18] sm:$0xff] %vm1260, %v1259
      %s1265 = smul.u32 4, %s16
      %p1266 = scmp.lt.s32.totalorder %s1265, 7
      %s1267 = scalar_select %p1266, %s1265, 7
      %s1268 = smul.addr %s1267, 8
      %s1269 = scalar_lea.vmem %s5, %s1268
      // Predicated region
      $region41: #{tpu_custom_call.1} parent=39 // pred_check
        %p1270 = pneg %p144
      $region42: #{tpu_custom_call.1} parent=39 // pred_check_branch
        %1272 = sbr.rel (%p1270) target = $region44
      $region43: #{tpu_custom_call.1} parent=39 // pred_region
        %s1273 = smul.u32 4, %s16
      $region44: #{tpu_custom_call.1} parent=39 // pred_fallthru
        _
    $region40: #{tpu_custom_call.1} parent=5 // pred_fallthru
      _
    %p1274 = scmp.le.s32.totalorder 2, %s11
    // Predicated region
    $region45: #{tpu_custom_call.1} parent=5 // pred_check
      %p1275 = pneg %p1274
    $region46: #{tpu_custom_call.1} parent=5 // pred_check_branch
      %1277 = sbr.rel (%p1275) target = $region48
    $region47: #{tpu_custom_call.1} parent=5 // pred_region
      %s1278 = ssub.s32 %s11, 2
      // Predicated region
      $region49: #{tpu_custom_call.1} parent=47 // pred_check
        %p1279 = pneg %p150
      $region50: #{tpu_custom_call.1} parent=47 // pred_check_branch
        %1281 = sbr.rel (%p1279) target = $region52
      $region51: #{tpu_custom_call.1} parent=47 // pred_region
        %s1282 = smul.u32 4, %s17
        %p1283 = scmp.lt.s32.totalorder %s1282, 7
        %s1284 = scalar_select %p1283, %s1282, 7
        %s1285 = smul.addr %s1284, 8
        %s1286 = scalar_lea.vmem %s5, %s1285
      $region52: #{tpu_custom_call.1} parent=47 // pred_fallthru
        _
    $region48: #{tpu_custom_call.1} parent=5 // pred_fallthru
      _
  $region6: #{tpu_custom_call.1} parent=0 // loop_footer
    %s15 = sadd.s32 1, %s11
  $region7: #{tpu_custom_call.1} parent=0 // loop_footer_branch
    %10 = sbr.rel target = $region3
  $region8: #{tpu_custom_call.1} parent=0 // loop_exit
    _

// kernel: tpu_custom_call.1
$region0: #{tpu_custom_call.1}
  #allocation0 [shape = 'u32[]', space=smem, size = 0x4, offset = 0x4, fixed_abs, tag = 'smem constant byte address 0x4 - core index']
  #allocation1 [shape = 'u32[144,128]{1,0:T(1,128)}', space=vmem, size = 0x12000, scoped, tag = 'internal scratch']
  %s0 = inlined_call_operand.vmem [shape: f32[64,2], index: 0, kind: input, shape index: {}]
  %s1 = inlined_call_operand.vmem [shape: f32[2,16], index: 1, kind: input, shape index: {}]
  %s2 = inlined_call_operand.vmem [shape: bf16[16,32], index: 2, kind: input, shape index: {}]
  %s3 = inlined_call_operand.vmem [shape: bf16[16,32], index: 3, kind: input, shape index: {}]
  %s4 = inlined_call_operand.vmem [shape: f32[1,32], index: 4, kind: input, shape index: {}]
  %s5 = inlined_call_operand.vmem [shape: f32[64,32], index: 5, kind: output, shape index: {}]
  %s6 = sld [smem:[#allocation0]]
  $region53: #{tpu_custom_call.1} parent=0
    _
  %s8 = ssub.s32 1, %s6
  %s9 = scalar_select 0, %s8, %s6
  loop: start=0, step=1, limit=4
  $region2: #{tpu_custom_call.1} parent=0 // loop_pre_header
    _
  $region3: #{tpu_custom_call.1} parent=0 // loop_header
    %s11 = sphi 0, %s15
    %p12 = scmp.ge.s32.totalorder %s11, 4
    %s21 = sphi 0, %s23
    %s24 = sphi 0, %s21
    %s25 = sphi 0, %s24
    %s41 = sphi 0, %s25
    %s45 = sphi 0, %s45
    %s47 = sphi 0, %s45
    %s48 = sphi 0, %s47
    %s62 = sphi 0, %s48
    %s66 = sphi 0, %s66
    %s68 = sphi 0, %s66
    %s69 = sphi 0, %s68
    %s83 = sphi 0, %s69
    %s87 = sphi 0, %s87
    %s89 = sphi 0, %s87
    %s90 = sphi 0, %s89
    %s104 = sphi 0, %s90
    %s108 = sphi 0, %s108
    %s110 = sphi 0, %s108
    %s111 = sphi 0, %s110
    %s125 = sphi 0, %s111
    %s131 = sphi 0, %s133
    %s134 = sphi 0, %s131
    %s135 = sphi 0, %s134
    %s151 = sphi 0, %s135
  $region4: #{tpu_custom_call.1} parent=0 // loop_header_branch
    %14 = sbr.rel (%p12) target = $region8
  $region5: #{tpu_custom_call.1} parent=0 // loop_body
    %s16 = ssub.s32 %s11, 1
    %s17 = ssub.s32 %s11, 2
    %s18 = sadd.s32 %s11, 1
    %s19 = ssub.s32 %s11, %s18
    %p20 = scmp.eq.s32.totalorder %s19, 0
    %s22 = sadd.s32 %s21, 1
    %s23 = scalar_select %p20, %s21, %s22
    %p26 = pneg %p20
    %p27 = scmp.eq.s32.totalorder %s11, 1
    %p28 = por %p26, %p27
    %p29 = scmp.ne.s32.totalorder %s21, %s24
    %p30 = scmp.eq.s32.totalorder %s11, 0
    %p31 = por %p29, %p30
    %p32 = scmp.ne.s32.totalorder %s21, %s24
    %p33 = scmp.eq.s32.totalorder %s16, 1
    %p34 = por %p32, %p33
    %p35 = scmp.ne.s32.totalorder %s24, %s25
    %p36 = scmp.eq.s32.totalorder %s16, 0
    %p37 = por %p35, %p36
    %p38 = scmp.ne.s32.totalorder %s24, %s25
    %p39 = scmp.eq.s32.totalorder %s17, 1
    %p40 = por %p38, %p39
    %p42 = scmp.ne.s32.totalorder %s25, %s41
    %p43 = scmp.eq.s32.totalorder %s17, 0
    %p44 = por %p42, %p43
    %s46 = sadd.s32 %s45, 1
    %p49 = scmp.eq.s32.totalorder %s11, 1
    %p50 = scmp.ne.s32.totalorder %s45, %s47
    %p51 = scmp.eq.s32.totalorder %s11, 0
    %p52 = por %p50, %p51
    %p53 = scmp.ne.s32.totalorder %s45, %s47
    %p54 = scmp.eq.s32.totalorder %s16, 1
    %p55 = por %p53, %p54
    %p56 = scmp.ne.s32.totalorder %s47, %s48
    %p57 = scmp.eq.s32.totalorder %s16, 0
    %p58 = por %p56, %p57
    %p59 = scmp.ne.s32.totalorder %s47, %s48
    %p60 = scmp.eq.s32.totalorder %s17, 1
    %p61 = por %p59, %p60
    %p63 = scmp.ne.s32.totalorder %s48, %s62
    %p64 = scmp.eq.s32.totalorder %s17, 0
    %p65 = por %p63, %p64
    %s67 = sadd.s32 %s66, 1
    %p70 = scmp.eq.s32.totalorder %s11, 1
    %p71 = scmp.ne.s32.totalorder %s66, %s68
    %p72 = scmp.eq.s32.totalorder %s11, 0
    %p73 = por %p71, %p72
    %p74 = scmp.ne.s32.totalorder %s66, %s68
    %p75 = scmp.eq.s32.totalorder %s16, 1
    %p76 = por %p74, %p75
    %p77 = scmp.ne.s32.totalorder %s68, %s69
    %p78 = scmp.eq.s32.totalorder %s16, 0
    %p79 = por %p77, %p78
    %p80 = scmp.ne.s32.totalorder %s68, %s69
    %p81 = scmp.eq.s32.totalorder %s17, 1
    %p82 = por %p80, %p81
    %p84 = scmp.ne.s32.totalorder %s69, %s83
    %p85 = scmp.eq.s32.totalorder %s17, 0
    %p86 = por %p84, %p85
    %s88 = sadd.s32 %s87, 1
    %p91 = scmp.eq.s32.totalorder %s11, 1
    %p92 = scmp.ne.s32.totalorder %s87, %s89
    %p93 = scmp.eq.s32.totalorder %s11, 0
    %p94 = por %p92, %p93
    %p95 = scmp.ne.s32.totalorder %s87, %s89
    %p96 = scmp.eq.s32.totalorder %s16, 1
    %p97 = por %p95, %p96
    %p98 = scmp.ne.s32.totalorder %s89, %s90
    %p99 = scmp.eq.s32.totalorder %s16, 0
    %p100 = por %p98, %p99
    %p101 = scmp.ne.s32.totalorder %s89, %s90
    %p102 = scmp.eq.s32.totalorder %s17, 1
    %p103 = por %p101, %p102
    %p105 = scmp.ne.s32.totalorder %s90, %s104
    %p106 = scmp.eq.s32.totalorder %s17, 0
    %p107 = por %p105, %p106
    %s109 = sadd.s32 %s108, 1
    %p112 = scmp.eq.s32.totalorder %s11, 1
    %p113 = scmp.ne.s32.totalorder %s108, %s110
    %p114 = scmp.eq.s32.totalorder %s11, 0
    %p115 = por %p113, %p114
    %p116 = scmp.ne.s32.totalorder %s108, %s110
    %p117 = scmp.eq.s32.totalorder %s16, 1
    %p118 = por %p116, %p117
    %p119 = scmp.ne.s32.totalorder %s110, %s111
    %p120 = scmp.eq.s32.totalorder %s16, 0
    %p121 = por %p119, %p120
    %p122 = scmp.ne.s32.totalorder %s110, %s111
    %p123 = scmp.eq.s32.totalorder %s17, 1
    %p124 = por %p122, %p123
    %p126 = scmp.ne.s32.totalorder %s111, %s125
    %p127 = scmp.eq.s32.totalorder %s17, 0
    %p128 = por %p126, %p127
    %s129 = ssub.s32 %s11, %s18
    %p130 = scmp.eq.s32.totalorder %s129, 0
    %s132 = sadd.s32 %s131, 1
    %s133 = scalar_select %p130, %s131, %s132
    %p136 = pneg %p130
    %p137 = scmp.eq.s32.totalorder %s11, 1
    %p138 = por %p136, %p137
    %p139 = scmp.ne.s32.totalorder %s131, %s134
    %p140 = scmp.eq.s32.totalorder %s11, 0
    %p141 = por %p139, %p140
    %p142 = scmp.ne.s32.totalorder %s131, %s134
    %p143 = scmp.eq.s32.totalorder %s16, 1
    %p144 = por %p142, %p143
    %p145 = scmp.ne.s32.totalorder %s134, %s135
    %p146 = scmp.eq.s32.totalorder %s16, 0
    %p147 = por %p145, %p146
    %p148 = scmp.ne.s32.totalorder %s134, %s135
    %p149 = scmp.eq.s32.totalorder %s17, 1
    %p150 = por %p148, %p149
    %p152 = scmp.ne.s32.totalorder %s135, %s151
    %p153 = scmp.eq.s32.totalorder %s17, 0
    %p154 = por %p152, %p153
    %p155 = scmp.le.s32.totalorder 1, %s11
    %p156 = scmp.lt.s32.totalorder %s11, 3
    %p157 = pnand %p155, %p156
    %p158 = pneg %p157
    // Predicated region
    $region9: #{tpu_custom_call.1} parent=5 // pred_check
      _
    $region10: #{tpu_custom_call.1} parent=5 // pred_check_branch
      %160 = sbr.rel (%p157) target = $region12
    $region11: #{tpu_custom_call.1} parent=5 // pred_region
      %s161 = ssub.s32 %s11, 1
      // Predicated region
      $region13: #{tpu_custom_call.1} parent=11 // pred_check
        %p162 = pneg %p58
      $region14: #{tpu_custom_call.1} parent=11 // pred_check_branch
        %164 = sbr.rel (%p162) target = $region16
      $region15: #{tpu_custom_call.1} parent=11 // pred_region
        _
      $region16: #{tpu_custom_call.1} parent=11 // pred_fallthru
        _
      // Predicated region
      $region17: #{tpu_custom_call.1} parent=11 // pred_check
        %p165 = pneg %p79
      $region18: #{tpu_custom_call.1} parent=11 // pred_check_branch
        %167 = sbr.rel (%p165) target = $region20
      $region19: #{tpu_custom_call.1} parent=11 // pred_region
        _
      $region20: #{tpu_custom_call.1} parent=11 // pred_fallthru
        _
      // Predicated region
      $region21: #{tpu_custom_call.1} parent=11 // pred_check
        %p168 = pneg %p100
      $region22: #{tpu_custom_call.1} parent=11 // pred_check_branch
        %170 = sbr.rel (%p168) target = $region24
      $region23: #{tpu_custom_call.1} parent=11 // pred_region
        _
      $region24: #{tpu_custom_call.1} parent=11 // pred_fallthru
        _
      // Predicated region
      $region25: #{tpu_custom_call.1} parent=11 // pred_check
        %p171 = pneg %p121
      $region26: #{tpu_custom_call.1} parent=11 // pred_check_branch
        %173 = sbr.rel (%p171) target = $region28
      $region27: #{tpu_custom_call.1} parent=11 // pred_region
        _
      $region28: #{tpu_custom_call.1} parent=11 // pred_fallthru
        _
    $region12: #{tpu_custom_call.1} parent=5 // pred_fallthru
      _
    %p174 = scmp.lt.s32.totalorder %s11, 2
    // Predicated region
    $region29: #{tpu_custom_call.1} parent=5 // pred_check
      %p175 = pneg %p174
    $region30: #{tpu_custom_call.1} parent=5 // pred_check_branch
      %177 = sbr.rel (%p175) target = $region32
    $region31: #{tpu_custom_call.1} parent=5 // pred_region
      // Predicated region
      $region33: #{tpu_custom_call.1} parent=31 // pred_check
        %p178 = pneg %p31
      $region34: #{tpu_custom_call.1} parent=31 // pred_check_branch
        %180 = sbr.rel (%p178) target = $region36
      $region35: #{tpu_custom_call.1} parent=31 // pred_region
        %s181 = smul.u32 4, %s11
        %p182 = scmp.lt.s32.totalorder %s181, 7
        %s183 = scalar_select %p182, %s181, 7
        %s184 = smul.addr %s183, 8
        %s185 = scalar_lea.vmem %s0, %s184
        %s186 = smul.u32 4, %s11
      $region36: #{tpu_custom_call.1} parent=31 // pred_fallthru
        _
    $region32: #{tpu_custom_call.1} parent=5 // pred_fallthru
      _
    %p187 = scmp.le.s32.totalorder 1, %s11
    %p188 = scmp.lt.s32.totalorder %s11, 3
    %p189 = pnand %p187, %p188
    %p190 = pneg %p189
    // Predicated region
    $region37: #{tpu_custom_call.1} parent=5 // pred_check
      _
    $region38: #{tpu_custom_call.1} parent=5 // pred_check_branch
      %192 = sbr.rel (%p189) target = $region40
    $region39: #{tpu_custom_call.1} parent=5 // pred_region
      %s193 = ssub.s32 %s11, 1
      %s194 = smul.u32 4, %s16
      %p195 = scmp.lt.s32.totalorder %s194, 7
      %s196 = scalar_select %p195, %s194, 7
      %s197 = smul.addr %s196, 8
      %s198 = scalar_lea.vmem %s0, %s197
      %p199 = pneg %p37
      %p200 = pneg %p34
      %p201 = pneg %p58
      %p202 = pneg %p55
      %p203 = pneg %p79
      %p204 = pneg %p76
      %p205 = pneg %p100
      %p206 = pneg %p97
      %p207 = pneg %p121
      %p208 = pneg %p118
      %p209 = pneg %p147
      %p210 = pneg %p144
      %s211 = smul.u32 4, %s16
      %p212 = scmp.lt.s32.totalorder %s211, 7
      %s213 = scalar_select %p212, %s211, 7
      %s214 = smul.addr %s213, 8
      %s215 = scalar_lea.vmem %s5, %s214
      %s216 = smul.u32 4, %s16
      %p217 = scmp.lt.s32.totalorder %s216, 7
      %s218 = scalar_select %p217, %s216, 7
      %s219 = smul.addr %s218, 8
      %s220 = scalar_lea.vmem %s0, %s219
      %s221 = smul.u32 4, %s16
      %s222 = smul.u32 4, %s16
      %p223 = scmp.lt.s32.totalorder %s222, 7
      %s224 = scalar_select %p223, %s222, 7
      %s225 = smul.addr %s224, 8
      %s226 = scalar_lea.vmem %s5, %s225
      %s227 = smul.u32 4, %s16
      %v229 = vld [vmem:[%s220] sm:$0xff]
      %v230 = vld [vmem:[%s220 + $0x8] sm:$0xff]
      %v231 = vld [vmem:[%s220 + $0x10] sm:$0xff]
      %v232 = vld [vmem:[%s220 + $0x18] sm:$0xff]
      %v233 = vld [vmem:[%s1] sm:$0x3]
      %235 = vset.pattern.permute.xlu0 0
      %236 = vperm.xlu0 %235, %v229
      %v237 = vpop.permute.xlu0 %236
      %240 = vset.pattern.permute.xlu0 0
      %241 = vperm.xlu0 %240, %v230
      %v242 = vpop.permute.xlu0 %241
      %245 = vset.pattern.permute.xlu0 0
      %246 = vperm.xlu0 %245, %v231
      %v247 = vpop.permute.xlu0 %246
      %250 = vset.pattern.permute.xlu0 0
      %251 = vperm.xlu0 %250, %v232
      %v252 = vpop.permute.xlu0 %251
      %v254 = vlaneseq
      %v255 = vshrl.u32 %v254, 7
      %v256 = vsub.s32 0, %v255
      %v257 = vrot.slane %v233, %v256
      %v258 = vmul.f32 %v237, %v257
      %v259 = vmul.f32 %v242, %v257
      %v260 = vmul.f32 %v247, %v257
      %v261 = vmul.f32 %v252, %v257
      %262 = vset.pattern.permute.xlu0 1
      %263 = vperm.xlu0 %262, %v229
      %v264 = vpop.permute.xlu0 %263
      %266 = vset.pattern.permute.xlu0 1
      %267 = vperm.xlu0 %266, %v230
      %v268 = vpop.permute.xlu0 %267
      %270 = vset.pattern.permute.xlu0 1
      %271 = vperm.xlu0 %270, %v231
      %v272 = vpop.permute.xlu0 %271
      %274 = vset.pattern.permute.xlu0 1
      %275 = vperm.xlu0 %274, %v232
      %v276 = vpop.permute.xlu0 %275
      %v278 = vlaneseq
      %v279 = vshrl.u32 %v278, 7
      %v280 = vsub.s32 1, %v279
      %v281 = vrot.slane %v233, %v280
      %v282 = vmul.f32 %v264, %v281
      %v283 = vmul.f32 %v268, %v281
      %v284 = vmul.f32 %v272, %v281
      %v285 = vmul.f32 %v276, %v281
      %v286 = vadd.f32 %v258, %v282
      %v287 = vadd.f32 %v259, %v283
      %v288 = vadd.f32 %v260, %v284
      %v289 = vadd.f32 %v261, %v285
      %v290 = vand.u32 2147483647, %v286
      %vm291 = vcmp.le.f32.partialorder %v290, 0.7853982
      %vm292 = vcmp.lt.s32.totalorder %v286, 0
      %v293 = vand.u32 %v286, 2139095040
      %v294 = vshrl.u32 %v293, 23
      %v295 = vsub.s32 %v294, 127
      %v296 = vand.u32 2147483647, %v286
      %v297 = vand.u32 %v296, 8388607
      %v298 = vor.u32 %v297, 8388608
      %v299 = vsub.s32 0, %v298
      %v300 = vadd.s32 %v295, 1
      %vm301 = vcmp.gt.s32.totalorder %v300, 0
      %v302 = vsel %vm301, %v300, 0
      %v303 = vshrl.u32 %v302, 5
      %v304 = vand.u32 %v302, 31
      %v305 = vsub.s32 32, %v304
      %v306 = vshrl.u32 683565275, %v305
      %v307 = vshll.u32 683565275, %v304
      %v308 = vshrl.u32 2475754826, %v305
      %v309 = vor.u32 %v307, %v308
      %v310 = vshll.u32 2475754826, %v304
      %v311 = vshrl.u32 2131351028, %v305
      %v312 = vor.u32 %v310, %v311
      %v313 = vshll.u32 2131351028, %v304
      %v314 = vshrl.u32 2102212464, %v305
      %v315 = vor.u32 %v313, %v314
      %v316 = vshll.u32 2102212464, %v304
      %v317 = vshrl.u32 920167782, %v305
      %v318 = vor.u32 %v316, %v317
      %v319 = vshll.u32 920167782, %v304
      %v320 = vshrl.u32 1326507024, %v305
      %v321 = vor.u32 %v319, %v320
      %vm322 = vcmp.lt.s32.totalorder %v303, 1
      %vm323 = vcmp.lt.s32.totalorder %v303, 2
      %vm324 = vcmp.lt.s32.totalorder %v303, 3
      %vm325 = vcmp.lt.s32.totalorder %v303, 4
      %v326 = vsel %vm322, %v306, %v309
      %v327 = vsel %vm325, %v315, 2102212464
      %v328 = vsel %vm324, %v312, %v327
      %v329 = vsel %vm323, %v326, %v328
      %v330 = vsel %vm322, %v309, %v312
      %v331 = vsel %vm325, %v318, 920167782
      %v332 = vsel %vm324, %v315, %v331
      %v333 = vsel %vm323, %v330, %v332
      %v334 = vsel %vm322, %v312, %v315
      %v335 = vsel %vm325, %v321, 1326507024
      %v336 = vsel %vm324, %v318, %v335
      %v337 = vsel %vm323, %v334, %v336
      %v338 = vshll.u32 %v298, 8
      %v339 = vmul.u32.u64.compose %v338, %v337
      %v340 = vextract.low.u32 %v339
      %v341 = vextract.high.u32 %v339
      %v342 = vmul.u32.u64.compose %v338, %v333
      %v343 = vextract.low.u32 %v342
      %v344 = vextract.high.u32 %v342
      %v345 = vmul.u32 %v338, %v329
      %v346 = vadd.s32 %v341, %v343
      %vm347 = vc.u32 %v341, %v343
      %v348 = vadd.s32 %v344, 1
      %v349 = vsel %vm347, %v348, %v344
      %v350 = vadd.s32 %v345, %v349
      %v351 = vadd.s32 %v350, 536870912
      %v352 = vshrl.u32 %v351, 30
      %v353 = vshll.u32 %v352, 30
      %v354 = vsub.s32 %v350, %v353
      %vm355 = vcmp.lt.s32.totalorder %v354, 0
      %v356 = vsub.s32 0, %v354
      %v357 = vsel %vm355, %v356, %v354
      %v358 = vclz %v357
      %v359 = vsub.s32 %v358, 2
      %vm360 = vcmp.gt.s32.totalorder 0, %v359
      %v361 = vsel %vm360, 0, %v359
      %v362 = vsub.s32 32, %v361
      %v363 = vshll.u32 %v354, %v361
      %v364 = vshrl.u32 %v346, %v362
      %v365 = vor.u32 %v363, %v364
      %v366 = vsub.s32 4294967266, %v361
      %v367 = vadd.s32 %v366, 127
      %v368 = vshll.u32 %v367, 23
      %v369 = vor.u32 4788187, %v368
      %v370 = vand.u32 2147483647, %v369
      %v372 = vcvt.s32.f32 %v365
      %v373 = vmul.f32 %v372, %v370
      %v374 = vxor.u32 %v373, 2147483648
      %v375 = vsel %vm292, %v374, %v373
      %v376 = vsub.s32 4, %v352
      %v377 = vsel %vm292, %v376, %v352
      %v378 = vsel %vm291, %v286, %v375
      %v379 = vsel %vm291, 0, %v377
      %v380 = vcosq.f32.pop %v378
      %v381 = vsinq.f32.pop %v378
      %vm382 = vweird.f32 %v286
      %v383 = vadd.s32 %v379, 3
      %v384 = vand.u32 %v383, 3
      %vm385 = vcmp.lt.s32.totalorder %v384, 2
      %vm386 = vcmp.eq.s32.totalorder %v384, 0
      %v387 = vxor.u32 %v381, 2147483648
      %v388 = vsel %vm386, %v380, %v387
      %vm389 = vcmp.eq.s32.totalorder %v384, 2
      %v390 = vxor.u32 %v380, 2147483648
      %v391 = vsel %vm389, %v390, %v381
      %v392 = vsel %vm385, %v388, %v391
      %v393 = vsel %vm382, nan, %v392
      %v394 = vand.u32 2147483647, %v287
      %vm395 = vcmp.le.f32.partialorder %v394, 0.7853982
      %vm396 = vcmp.lt.s32.totalorder %v287, 0
      %v397 = vand.u32 %v287, 2139095040
      %v398 = vshrl.u32 %v397, 23
      %v399 = vsub.s32 %v398, 127
      %v400 = vand.u32 2147483647, %v287
      %v401 = vand.u32 %v400, 8388607
      %v402 = vor.u32 %v401, 8388608
      %v403 = vsub.s32 0, %v402
      %v404 = vadd.s32 %v399, 1
      %vm405 = vcmp.gt.s32.totalorder %v404, 0
      %v406 = vsel %vm405, %v404, 0
      %v407 = vshrl.u32 %v406, 5
      %v408 = vand.u32 %v406, 31
      %v409 = vsub.s32 32, %v408
      %v410 = vshrl.u32 683565275, %v409
      %v411 = vshll.u32 683565275, %v408
      %v412 = vshrl.u32 2475754826, %v409
      %v413 = vor.u32 %v411, %v412
      %v414 = vshll.u32 2475754826, %v408
      %v415 = vshrl.u32 2131351028, %v409
      %v416 = vor.u32 %v414, %v415
      %v417 = vshll.u32 2131351028, %v408
      %v418 = vshrl.u32 2102212464, %v409
      %v419 = vor.u32 %v417, %v418
      %v420 = vshll.u32 2102212464, %v408
      %v421 = vshrl.u32 920167782, %v409
      %v422 = vor.u32 %v420, %v421
      %v423 = vshll.u32 920167782, %v408
      %v424 = vshrl.u32 1326507024, %v409
      %v425 = vor.u32 %v423, %v424
      %vm426 = vcmp.lt.s32.totalorder %v407, 1
      %vm427 = vcmp.lt.s32.totalorder %v407, 2
      %vm428 = vcmp.lt.s32.totalorder %v407, 3
      %vm429 = vcmp.lt.s32.totalorder %v407, 4
      %v430 = vsel %vm426, %v410, %v413
      %v431 = vsel %vm429, %v419, 2102212464
      %v432 = vsel %vm428, %v416, %v431
      %v433 = vsel %vm427, %v430, %v432
      %v434 = vsel %vm426, %v413, %v416
      %v435 = vsel %vm429, %v422, 920167782
      %v436 = vsel %vm428, %v419, %v435
      %v437 = vsel %vm427, %v434, %v436
      %v438 = vsel %vm426, %v416, %v419
      %v439 = vsel %vm429, %v425, 1326507024
      %v440 = vsel %vm428, %v422, %v439
      %v441 = vsel %vm427, %v438, %v440
      %v442 = vshll.u32 %v402, 8
      %v443 = vmul.u32.u64.compose %v442, %v441
      %v444 = vextract.low.u32 %v443
      %v445 = vextract.high.u32 %v443
      %v446 = vmul.u32.u64.compose %v442, %v437
      %v447 = vextract.low.u32 %v446
      %v448 = vextract.high.u32 %v446
      %v449 = vmul.u32 %v442, %v433
      %v450 = vadd.s32 %v445, %v447
      %vm451 = vc.u32 %v445, %v447
      %v452 = vadd.s32 %v448, 1
      %v453 = vsel %vm451, %v452, %v448
      %v454 = vadd.s32 %v449, %v453
      %v455 = vadd.s32 %v454, 536870912
      %v456 = vshrl.u32 %v455, 30
      %v457 = vshll.u32 %v456, 30
      %v458 = vsub.s32 %v454, %v457
      %vm459 = vcmp.lt.s32.totalorder %v458, 0
      %v460 = vsub.s32 0, %v458
      %v461 = vsel %vm459, %v460, %v458
      %v462 = vclz %v461
      %v463 = vsub.s32 %v462, 2
      %vm464 = vcmp.gt.s32.totalorder 0, %v463
      %v465 = vsel %vm464, 0, %v463
      %v466 = vsub.s32 32, %v465
      %v467 = vshll.u32 %v458, %v465
      %v468 = vshrl.u32 %v450, %v466
      %v469 = vor.u32 %v467, %v468
      %v470 = vsub.s32 4294967266, %v465
      %v471 = vadd.s32 %v470, 127
      %v472 = vshll.u32 %v471, 23
      %v473 = vor.u32 4788187, %v472
      %v474 = vand.u32 2147483647, %v473
      %v476 = vcvt.s32.f32 %v469
      %v477 = vmul.f32 %v476, %v474
      %v478 = vxor.u32 %v477, 2147483648
      %v479 = vsel %vm396, %v478, %v477
      %v480 = vsub.s32 4, %v456
      %v481 = vsel %vm396, %v480, %v456
      %v482 = vsel %vm395, %v287, %v479
      %v483 = vsel %vm395, 0, %v481
      %v484 = vcosq.f32.pop %v482
      %v485 = vsinq.f32.pop %v482
      %vm486 = vweird.f32 %v287
      %v487 = vadd.s32 %v483, 3
      %v488 = vand.u32 %v487, 3
      %vm489 = vcmp.lt.s32.totalorder %v488, 2
      %vm490 = vcmp.eq.s32.totalorder %v488, 0
      %v491 = vxor.u32 %v485, 2147483648
      %v492 = vsel %vm490, %v484, %v491
      %vm493 = vcmp.eq.s32.totalorder %v488, 2
      %v494 = vxor.u32 %v484, 2147483648
      %v495 = vsel %vm493, %v494, %v485
      %v496 = vsel %vm489, %v492, %v495
      %v497 = vsel %vm486, nan, %v496
      %v498 = vand.u32 2147483647, %v288
      %vm499 = vcmp.le.f32.partialorder %v498, 0.7853982
      %vm500 = vcmp.lt.s32.totalorder %v288, 0
      %v501 = vand.u32 %v288, 2139095040
      %v502 = vshrl.u32 %v501, 23
      %v503 = vsub.s32 %v502, 127
      %v504 = vand.u32 2147483647, %v288
      %v505 = vand.u32 %v504, 8388607
      %v506 = vor.u32 %v505, 8388608
      %v507 = vsub.s32 0, %v506
      %v508 = vadd.s32 %v503, 1
      %vm509 = vcmp.gt.s32.totalorder %v508, 0
      %v510 = vsel %vm509, %v508, 0
      %v511 = vshrl.u32 %v510, 5
      %v512 = vand.u32 %v510, 31
      %v513 = vsub.s32 32, %v512
      %v514 = vshrl.u32 683565275, %v513
      %v515 = vshll.u32 683565275, %v512
      %v516 = vshrl.u32 2475754826, %v513
      %v517 = vor.u32 %v515, %v516
      %v518 = vshll.u32 2475754826, %v512
      %v519 = vshrl.u32 2131351028, %v513
      %v520 = vor.u32 %v518, %v519
      %v521 = vshll.u32 2131351028, %v512
      %v522 = vshrl.u32 2102212464, %v513
      %v523 = vor.u32 %v521, %v522
      %v524 = vshll.u32 2102212464, %v512
      %v525 = vshrl.u32 920167782, %v513
      %v526 = vor.u32 %v524, %v525
      %v527 = vshll.u32 920167782, %v512
      %v528 = vshrl.u32 1326507024, %v513
      %v529 = vor.u32 %v527, %v528
      %vm530 = vcmp.lt.s32.totalorder %v511, 1
      %vm531 = vcmp.lt.s32.totalorder %v511, 2
      %vm532 = vcmp.lt.s32.totalorder %v511, 3
      %vm533 = vcmp.lt.s32.totalorder %v511, 4
      %v534 = vsel %vm530, %v514, %v517
      %v535 = vsel %vm533, %v523, 2102212464
      %v536 = vsel %vm532, %v520, %v535
      %v537 = vsel %vm531, %v534, %v536
      %v538 = vsel %vm530, %v517, %v520
      %v539 = vsel %vm533, %v526, 920167782
      %v540 = vsel %vm532, %v523, %v539
      %v541 = vsel %vm531, %v538, %v540
      %v542 = vsel %vm530, %v520, %v523
      %v543 = vsel %vm533, %v529, 1326507024
      %v544 = vsel %vm532, %v526, %v543
      %v545 = vsel %vm531, %v542, %v544
      %v546 = vshll.u32 %v506, 8
      %v547 = vmul.u32.u64.compose %v546, %v545
      %v548 = vextract.low.u32 %v547
      %v549 = vextract.high.u32 %v547
      %v550 = vmul.u32.u64.compose %v546, %v541
      %v551 = vextract.low.u32 %v550
      %v552 = vextract.high.u32 %v550
      %v553 = vmul.u32 %v546, %v537
      %v554 = vadd.s32 %v549, %v551
      %vm555 = vc.u32 %v549, %v551
      %v556 = vadd.s32 %v552, 1
      %v557 = vsel %vm555, %v556, %v552
      %v558 = vadd.s32 %v553, %v557
      %v559 = vadd.s32 %v558, 536870912
      %v560 = vshrl.u32 %v559, 30
      %v561 = vshll.u32 %v560, 30
      %v562 = vsub.s32 %v558, %v561
      %vm563 = vcmp.lt.s32.totalorder %v562, 0
      %v564 = vsub.s32 0, %v562
      %v565 = vsel %vm563, %v564, %v562
      %v566 = vclz %v565
      %v567 = vsub.s32 %v566, 2
      %vm568 = vcmp.gt.s32.totalorder 0, %v567
      %v569 = vsel %vm568, 0, %v567
      %v570 = vsub.s32 32, %v569
      %v571 = vshll.u32 %v562, %v569
      %v572 = vshrl.u32 %v554, %v570
      %v573 = vor.u32 %v571, %v572
      %v574 = vsub.s32 4294967266, %v569
      %v575 = vadd.s32 %v574, 127
      %v576 = vshll.u32 %v575, 23
      %v577 = vor.u32 4788187, %v576
      %v578 = vand.u32 2147483647, %v577
      %v580 = vcvt.s32.f32 %v573
      %v581 = vmul.f32 %v580, %v578
      %v582 = vxor.u32 %v581, 2147483648
      %v583 = vsel %vm500, %v582, %v581
      %v584 = vsub.s32 4, %v560
      %v585 = vsel %vm500, %v584, %v560
      %v586 = vsel %vm499, %v288, %v583
      %v587 = vsel %vm499, 0, %v585
      %v588 = vcosq.f32.pop %v586
      %v589 = vsinq.f32.pop %v586
      %vm590 = vweird.f32 %v288
      %v591 = vadd.s32 %v587, 3
      %v592 = vand.u32 %v591, 3
      %vm593 = vcmp.lt.s32.totalorder %v592, 2
      %vm594 = vcmp.eq.s32.totalorder %v592, 0
      %v595 = vxor.u32 %v589, 2147483648
      %v596 = vsel %vm594, %v588, %v595
      %vm597 = vcmp.eq.s32.totalorder %v592, 2
      %v598 = vxor.u32 %v588, 2147483648
      %v599 = vsel %vm597, %v598, %v589
      %v600 = vsel %vm593, %v596, %v599
      %v601 = vsel %vm590, nan, %v600
      %v602 = vand.u32 2147483647, %v289
      %vm603 = vcmp.le.f32.partialorder %v602, 0.7853982
      %vm604 = vcmp.lt.s32.totalorder %v289, 0
      %v605 = vand.u32 %v289, 2139095040
      %v606 = vshrl.u32 %v605, 23
      %v607 = vsub.s32 %v606, 127
      %v608 = vand.u32 2147483647, %v289
      %v609 = vand.u32 %v608, 8388607
      %v610 = vor.u32 %v609, 8388608
      %v611 = vsub.s32 0, %v610
      %v612 = vadd.s32 %v607, 1
      %vm613 = vcmp.gt.s32.totalorder %v612, 0
      %v614 = vsel %vm613, %v612, 0
      %v615 = vshrl.u32 %v614, 5
      %v616 = vand.u32 %v614, 31
      %v617 = vsub.s32 32, %v616
      %v618 = vshrl.u32 683565275, %v617
      %v619 = vshll.u32 683565275, %v616
      %v620 = vshrl.u32 2475754826, %v617
      %v621 = vor.u32 %v619, %v620
      %v622 = vshll.u32 2475754826, %v616
      %v623 = vshrl.u32 2131351028, %v617
      %v624 = vor.u32 %v622, %v623
      %v625 = vshll.u32 2131351028, %v616
      %v626 = vshrl.u32 2102212464, %v617
      %v627 = vor.u32 %v625, %v626
      %v628 = vshll.u32 2102212464, %v616
      %v629 = vshrl.u32 920167782, %v617
      %v630 = vor.u32 %v628, %v629
      %v631 = vshll.u32 920167782, %v616
      %v632 = vshrl.u32 1326507024, %v617
      %v633 = vor.u32 %v631, %v632
      %vm634 = vcmp.lt.s32.totalorder %v615, 1
      %vm635 = vcmp.lt.s32.totalorder %v615, 2
      %vm636 = vcmp.lt.s32.totalorder %v615, 3
      %vm637 = vcmp.lt.s32.totalorder %v615, 4
      %v638 = vsel %vm634, %v618, %v621
      %v639 = vsel %vm637, %v627, 2102212464
      %v640 = vsel %vm636, %v624, %v639
      %v641 = vsel %vm635, %v638, %v640
      %v642 = vsel %vm634, %v621, %v624
      %v643 = vsel %vm637, %v630, 920167782
      %v644 = vsel %vm636, %v627, %v643
      %v645 = vsel %vm635, %v642, %v644
      %v646 = vsel %vm634, %v624, %v627
      %v647 = vsel %vm637, %v633, 1326507024
      %v648 = vsel %vm636, %v630, %v647
      %v649 = vsel %vm635, %v646, %v648
      %v650 = vshll.u32 %v610, 8
      %v651 = vmul.u32.u64.compose %v650, %v649
      %v652 = vextract.low.u32 %v651
      %v653 = vextract.high.u32 %v651
      %v654 = vmul.u32.u64.compose %v650, %v645
      %v655 = vextract.low.u32 %v654
      %v656 = vextract.high.u32 %v654
      %v657 = vmul.u32 %v650, %v641
      %v658 = vadd.s32 %v653, %v655
      %vm659 = vc.u32 %v653, %v655
      %v660 = vadd.s32 %v656, 1
      %v661 = vsel %vm659, %v660, %v656
      %v662 = vadd.s32 %v657, %v661
      %v663 = vadd.s32 %v662, 536870912
      %v664 = vshrl.u32 %v663, 30
      %v665 = vshll.u32 %v664, 30
      %v666 = vsub.s32 %v662, %v665
      %vm667 = vcmp.lt.s32.totalorder %v666, 0
      %v668 = vsub.s32 0, %v666
      %v669 = vsel %vm667, %v668, %v666
      %v670 = vclz %v669
      %v671 = vsub.s32 %v670, 2
      %vm672 = vcmp.gt.s32.totalorder 0, %v671
      %v673 = vsel %vm672, 0, %v671
      %v674 = vsub.s32 32, %v673
      %v675 = vshll.u32 %v666, %v673
      %v676 = vshrl.u32 %v658, %v674
      %v677 = vor.u32 %v675, %v676
      %v678 = vsub.s32 4294967266, %v673
      %v679 = vadd.s32 %v678, 127
      %v680 = vshll.u32 %v679, 23
      %v681 = vor.u32 4788187, %v680
      %v682 = vand.u32 2147483647, %v681
      %v684 = vcvt.s32.f32 %v677
      %v685 = vmul.f32 %v684, %v682
      %v686 = vxor.u32 %v685, 2147483648
      %v687 = vsel %vm604, %v686, %v685
      %v688 = vsub.s32 4, %v664
      %v689 = vsel %vm604, %v688, %v664
      %v690 = vsel %vm603, %v289, %v687
      %v691 = vsel %vm603, 0, %v689
      %v692 = vcosq.f32.pop %v690
      %v693 = vsinq.f32.pop %v690
      %vm694 = vweird.f32 %v289
      %v695 = vadd.s32 %v691, 3
      %v696 = vand.u32 %v695, 3
      %vm697 = vcmp.lt.s32.totalorder %v696, 2
      %vm698 = vcmp.eq.s32.totalorder %v696, 0
      %v699 = vxor.u32 %v693, 2147483648
      %v700 = vsel %vm698, %v692, %v699
      %vm701 = vcmp.eq.s32.totalorder %v696, 2
      %v702 = vxor.u32 %v692, 2147483648
      %v703 = vsel %vm701, %v702, %v693
      %v704 = vsel %vm697, %v700, %v703
      %v705 = vsel %vm694, nan, %v704
      %v706 = vpack.c.bf16 %v497, %v393
      %v707 = vpack.c.bf16 %v705, %v601
      %v708 = vand.u32 2147483647, %v286
      %vm709 = vcmp.le.f32.partialorder %v708, 0.7853982
      %vm710 = vcmp.lt.s32.totalorder %v286, 0
      %v711 = vand.u32 %v286, 2139095040
      %v712 = vshrl.u32 %v711, 23
      %v713 = vsub.s32 %v712, 127
      %v714 = vand.u32 2147483647, %v286
      %v715 = vand.u32 %v714, 8388607
      %v716 = vor.u32 %v715, 8388608
      %v717 = vsub.s32 0, %v716
      %v718 = vadd.s32 %v713, 1
      %vm719 = vcmp.gt.s32.totalorder %v718, 0
      %v720 = vsel %vm719, %v718, 0
      %v721 = vshrl.u32 %v720, 5
      %v722 = vand.u32 %v720, 31
      %v723 = vsub.s32 32, %v722
      %v724 = vshrl.u32 683565275, %v723
      %v725 = vshll.u32 683565275, %v722
      %v726 = vshrl.u32 2475754826, %v723
      %v727 = vor.u32 %v725, %v726
      %v728 = vshll.u32 2475754826, %v722
      %v729 = vshrl.u32 2131351028, %v723
      %v730 = vor.u32 %v728, %v729
      %v731 = vshll.u32 2131351028, %v722
      %v732 = vshrl.u32 2102212464, %v723
      %v733 = vor.u32 %v731, %v732
      %v734 = vshll.u32 2102212464, %v722
      %v735 = vshrl.u32 920167782, %v723
      %v736 = vor.u32 %v734, %v735
      %v737 = vshll.u32 920167782, %v722
      %v738 = vshrl.u32 1326507024, %v723
      %v739 = vor.u32 %v737, %v738
      %vm740 = vcmp.lt.s32.totalorder %v721, 1
      %vm741 = vcmp.lt.s32.totalorder %v721, 2
      %vm742 = vcmp.lt.s32.totalorder %v721, 3
      %vm743 = vcmp.lt.s32.totalorder %v721, 4
      %v744 = vsel %vm740, %v724, %v727
      %v745 = vsel %vm743, %v733, 2102212464
      %v746 = vsel %vm742, %v730, %v745
      %v747 = vsel %vm741, %v744, %v746
      %v748 = vsel %vm740, %v727, %v730
      %v749 = vsel %vm743, %v736, 920167782
      %v750 = vsel %vm742, %v733, %v749
      %v751 = vsel %vm741, %v748, %v750
      %v752 = vsel %vm740, %v730, %v733
      %v753 = vsel %vm743, %v739, 1326507024
      %v754 = vsel %vm742, %v736, %v753
      %v755 = vsel %vm741, %v752, %v754
      %v756 = vshll.u32 %v716, 8
      %v757 = vmul.u32.u64.compose %v756, %v755
      %v758 = vextract.low.u32 %v757
      %v759 = vextract.high.u32 %v757
      %v760 = vmul.u32.u64.compose %v756, %v751
      %v761 = vextract.low.u32 %v760
      %v762 = vextract.high.u32 %v760
      %v763 = vmul.u32 %v756, %v747
      %v764 = vadd.s32 %v759, %v761
      %vm765 = vc.u32 %v759, %v761
      %v766 = vadd.s32 %v762, 1
      %v767 = vsel %vm765, %v766, %v762
      %v768 = vadd.s32 %v763, %v767
      %v769 = vadd.s32 %v768, 536870912
      %v770 = vshrl.u32 %v769, 30
      %v771 = vshll.u32 %v770, 30
      %v772 = vsub.s32 %v768, %v771
      %vm773 = vcmp.lt.s32.totalorder %v772, 0
      %v774 = vsub.s32 0, %v772
      %v775 = vsel %vm773, %v774, %v772
      %v776 = vclz %v775
      %v777 = vsub.s32 %v776, 2
      %vm778 = vcmp.gt.s32.totalorder 0, %v777
      %v779 = vsel %vm778, 0, %v777
      %v780 = vsub.s32 32, %v779
      %v781 = vshll.u32 %v772, %v779
      %v782 = vshrl.u32 %v764, %v780
      %v783 = vor.u32 %v781, %v782
      %v784 = vsub.s32 4294967266, %v779
      %v785 = vadd.s32 %v784, 127
      %v786 = vshll.u32 %v785, 23
      %v787 = vor.u32 4788187, %v786
      %v788 = vand.u32 2147483647, %v787
      %v790 = vcvt.s32.f32 %v783
      %v791 = vmul.f32 %v790, %v788
      %v792 = vxor.u32 %v791, 2147483648
      %v793 = vsel %vm710, %v792, %v791
      %v794 = vsub.s32 4, %v770
      %v795 = vsel %vm710, %v794, %v770
      %v796 = vsel %vm709, %v286, %v793
      %v797 = vsel %vm709, 0, %v795
      %v798 = vcosq.f32.pop %v796
      %v799 = vsinq.f32.pop %v796
      %vm800 = vweird.f32 %v286
      %v801 = vand.u32 %v797, 3
      %vm802 = vcmp.lt.s32.totalorder %v801, 2
      %vm803 = vcmp.eq.s32.totalorder %v801, 0
      %v804 = vxor.u32 %v799, 2147483648
      %v805 = vsel %vm803, %v798, %v804
      %vm806 = vcmp.eq.s32.totalorder %v801, 2
      %v807 = vxor.u32 %v798, 2147483648
      %v808 = vsel %vm806, %v807, %v799
      %v809 = vsel %vm802, %v805, %v808
      %v810 = vsel %vm800, nan, %v809
      %v811 = vand.u32 2147483647, %v287
      %vm812 = vcmp.le.f32.partialorder %v811, 0.7853982
      %vm813 = vcmp.lt.s32.totalorder %v287, 0
      %v814 = vand.u32 %v287, 2139095040
      %v815 = vshrl.u32 %v814, 23
      %v816 = vsub.s32 %v815, 127
      %v817 = vand.u32 2147483647, %v287
      %v818 = vand.u32 %v817, 8388607
      %v819 = vor.u32 %v818, 8388608
      %v820 = vsub.s32 0, %v819
      %v821 = vadd.s32 %v816, 1
      %vm822 = vcmp.gt.s32.totalorder %v821, 0
      %v823 = vsel %vm822, %v821, 0
      %v824 = vshrl.u32 %v823, 5
      %v825 = vand.u32 %v823, 31
      %v826 = vsub.s32 32, %v825
      %v827 = vshrl.u32 683565275, %v826
      %v828 = vshll.u32 683565275, %v825
      %v829 = vshrl.u32 2475754826, %v826
      %v830 = vor.u32 %v828, %v829
      %v831 = vshll.u32 2475754826, %v825
      %v832 = vshrl.u32 2131351028, %v826
      %v833 = vor.u32 %v831, %v832
      %v834 = vshll.u32 2131351028, %v825
      %v835 = vshrl.u32 2102212464, %v826
      %v836 = vor.u32 %v834, %v835
      %v837 = vshll.u32 2102212464, %v825
      %v838 = vshrl.u32 920167782, %v826
      %v839 = vor.u32 %v837, %v838
      %v840 = vshll.u32 920167782, %v825
      %v841 = vshrl.u32 1326507024, %v826
      %v842 = vor.u32 %v840, %v841
      %vm843 = vcmp.lt.s32.totalorder %v824, 1
      %vm844 = vcmp.lt.s32.totalorder %v824, 2
      %vm845 = vcmp.lt.s32.totalorder %v824, 3
      %vm846 = vcmp.lt.s32.totalorder %v824, 4
      %v847 = vsel %vm843, %v827, %v830
      %v848 = vsel %vm846, %v836, 2102212464
      %v849 = vsel %vm845, %v833, %v848
      %v850 = vsel %vm844, %v847, %v849
      %v851 = vsel %vm843, %v830, %v833
      %v852 = vsel %vm846, %v839, 920167782
      %v853 = vsel %vm845, %v836, %v852
      %v854 = vsel %vm844, %v851, %v853
      %v855 = vsel %vm843, %v833, %v836
      %v856 = vsel %vm846, %v842, 1326507024
      %v857 = vsel %vm845, %v839, %v856
      %v858 = vsel %vm844, %v855, %v857
      %v859 = vshll.u32 %v819, 8
      %v860 = vmul.u32.u64.compose %v859, %v858
      %v861 = vextract.low.u32 %v860
      %v862 = vextract.high.u32 %v860
      %v863 = vmul.u32.u64.compose %v859, %v854
      %v864 = vextract.low.u32 %v863
      %v865 = vextract.high.u32 %v863
      %v866 = vmul.u32 %v859, %v850
      %v867 = vadd.s32 %v862, %v864
      %vm868 = vc.u32 %v862, %v864
      %v869 = vadd.s32 %v865, 1
      %v870 = vsel %vm868, %v869, %v865
      %v871 = vadd.s32 %v866, %v870
      %v872 = vadd.s32 %v871, 536870912
      %v873 = vshrl.u32 %v872, 30
      %v874 = vshll.u32 %v873, 30
      %v875 = vsub.s32 %v871, %v874
      %vm876 = vcmp.lt.s32.totalorder %v875, 0
      %v877 = vsub.s32 0, %v875
      %v878 = vsel %vm876, %v877, %v875
      %v879 = vclz %v878
      %v880 = vsub.s32 %v879, 2
      %vm881 = vcmp.gt.s32.totalorder 0, %v880
      %v882 = vsel %vm881, 0, %v880
      %v883 = vsub.s32 32, %v882
      %v884 = vshll.u32 %v875, %v882
      %v885 = vshrl.u32 %v867, %v883
      %v886 = vor.u32 %v884, %v885
      %v887 = vsub.s32 4294967266, %v882
      %v888 = vadd.s32 %v887, 127
      %v889 = vshll.u32 %v888, 23
      %v890 = vor.u32 4788187, %v889
      %v891 = vand.u32 2147483647, %v890
      %v893 = vcvt.s32.f32 %v886
      %v894 = vmul.f32 %v893, %v891
      %v895 = vxor.u32 %v894, 2147483648
      %v896 = vsel %vm813, %v895, %v894
      %v897 = vsub.s32 4, %v873
      %v898 = vsel %vm813, %v897, %v873
      %v899 = vsel %vm812, %v287, %v896
      %v900 = vsel %vm812, 0, %v898
      %v901 = vcosq.f32.pop %v899
      %v902 = vsinq.f32.pop %v899
      %vm903 = vweird.f32 %v287
      %v904 = vand.u32 %v900, 3
      %vm905 = vcmp.lt.s32.totalorder %v904, 2
      %vm906 = vcmp.eq.s32.totalorder %v904, 0
      %v907 = vxor.u32 %v902, 2147483648
      %v908 = vsel %vm906, %v901, %v907
      %vm909 = vcmp.eq.s32.totalorder %v904, 2
      %v910 = vxor.u32 %v901, 2147483648
      %v911 = vsel %vm909, %v910, %v902
      %v912 = vsel %vm905, %v908, %v911
      %v913 = vsel %vm903, nan, %v912
      %v914 = vand.u32 2147483647, %v288
      %vm915 = vcmp.le.f32.partialorder %v914, 0.7853982
      %vm916 = vcmp.lt.s32.totalorder %v288, 0
      %v917 = vand.u32 %v288, 2139095040
      %v918 = vshrl.u32 %v917, 23
      %v919 = vsub.s32 %v918, 127
      %v920 = vand.u32 2147483647, %v288
      %v921 = vand.u32 %v920, 8388607
      %v922 = vor.u32 %v921, 8388608
      %v923 = vsub.s32 0, %v922
      %v924 = vadd.s32 %v919, 1
      %vm925 = vcmp.gt.s32.totalorder %v924, 0
      %v926 = vsel %vm925, %v924, 0
      %v927 = vshrl.u32 %v926, 5
      %v928 = vand.u32 %v926, 31
      %v929 = vsub.s32 32, %v928
      %v930 = vshrl.u32 683565275, %v929
      %v931 = vshll.u32 683565275, %v928
      %v932 = vshrl.u32 2475754826, %v929
      %v933 = vor.u32 %v931, %v932
      %v934 = vshll.u32 2475754826, %v928
      %v935 = vshrl.u32 2131351028, %v929
      %v936 = vor.u32 %v934, %v935
      %v937 = vshll.u32 2131351028, %v928
      %v938 = vshrl.u32 2102212464, %v929
      %v939 = vor.u32 %v937, %v938
      %v940 = vshll.u32 2102212464, %v928
      %v941 = vshrl.u32 920167782, %v929
      %v942 = vor.u32 %v940, %v941
      %v943 = vshll.u32 920167782, %v928
      %v944 = vshrl.u32 1326507024, %v929
      %v945 = vor.u32 %v943, %v944
      %vm946 = vcmp.lt.s32.totalorder %v927, 1
      %vm947 = vcmp.lt.s32.totalorder %v927, 2
      %vm948 = vcmp.lt.s32.totalorder %v927, 3
      %vm949 = vcmp.lt.s32.totalorder %v927, 4
      %v950 = vsel %vm946, %v930, %v933
      %v951 = vsel %vm949, %v939, 2102212464
      %v952 = vsel %vm948, %v936, %v951
      %v953 = vsel %vm947, %v950, %v952
      %v954 = vsel %vm946, %v933, %v936
      %v955 = vsel %vm949, %v942, 920167782
      %v956 = vsel %vm948, %v939, %v955
      %v957 = vsel %vm947, %v954, %v956
      %v958 = vsel %vm946, %v936, %v939
      %v959 = vsel %vm949, %v945, 1326507024
      %v960 = vsel %vm948, %v942, %v959
      %v961 = vsel %vm947, %v958, %v960
      %v962 = vshll.u32 %v922, 8
      %v963 = vmul.u32.u64.compose %v962, %v961
      %v964 = vextract.low.u32 %v963
      %v965 = vextract.high.u32 %v963
      %v966 = vmul.u32.u64.compose %v962, %v957
      %v967 = vextract.low.u32 %v966
      %v968 = vextract.high.u32 %v966
      %v969 = vmul.u32 %v962, %v953
      %v970 = vadd.s32 %v965, %v967
      %vm971 = vc.u32 %v965, %v967
      %v972 = vadd.s32 %v968, 1
      %v973 = vsel %vm971, %v972, %v968
      %v974 = vadd.s32 %v969, %v973
      %v975 = vadd.s32 %v974, 536870912
      %v976 = vshrl.u32 %v975, 30
      %v977 = vshll.u32 %v976, 30
      %v978 = vsub.s32 %v974, %v977
      %vm979 = vcmp.lt.s32.totalorder %v978, 0
      %v980 = vsub.s32 0, %v978
      %v981 = vsel %vm979, %v980, %v978
      %v982 = vclz %v981
      %v983 = vsub.s32 %v982, 2
      %vm984 = vcmp.gt.s32.totalorder 0, %v983
      %v985 = vsel %vm984, 0, %v983
      %v986 = vsub.s32 32, %v985
      %v987 = vshll.u32 %v978, %v985
      %v988 = vshrl.u32 %v970, %v986
      %v989 = vor.u32 %v987, %v988
      %v990 = vsub.s32 4294967266, %v985
      %v991 = vadd.s32 %v990, 127
      %v992 = vshll.u32 %v991, 23
      %v993 = vor.u32 4788187, %v992
      %v994 = vand.u32 2147483647, %v993
      %v996 = vcvt.s32.f32 %v989
      %v997 = vmul.f32 %v996, %v994
      %v998 = vxor.u32 %v997, 2147483648
      %v999 = vsel %vm916, %v998, %v997
      %v1000 = vsub.s32 4, %v976
      %v1001 = vsel %vm916, %v1000, %v976
      %v1002 = vsel %vm915, %v288, %v999
      %v1003 = vsel %vm915, 0, %v1001
      %v1004 = vcosq.f32.pop %v1002
      %v1005 = vsinq.f32.pop %v1002
      %vm1006 = vweird.f32 %v288
      %v1007 = vand.u32 %v1003, 3
      %vm1008 = vcmp.lt.s32.totalorder %v1007, 2
      %vm1009 = vcmp.eq.s32.totalorder %v1007, 0
      %v1010 = vxor.u32 %v1005, 2147483648
      %v1011 = vsel %vm1009, %v1004, %v1010
      %vm1012 = vcmp.eq.s32.totalorder %v1007, 2
      %v1013 = vxor.u32 %v1004, 2147483648
      %v1014 = vsel %vm1012, %v1013, %v1005
      %v1015 = vsel %vm1008, %v1011, %v1014
      %v1016 = vsel %vm1006, nan, %v1015
      %v1017 = vand.u32 2147483647, %v289
      %vm1018 = vcmp.le.f32.partialorder %v1017, 0.7853982
      %vm1019 = vcmp.lt.s32.totalorder %v289, 0
      %v1020 = vand.u32 %v289, 2139095040
      %v1021 = vshrl.u32 %v1020, 23
      %v1022 = vsub.s32 %v1021, 127
      %v1023 = vand.u32 2147483647, %v289
      %v1024 = vand.u32 %v1023, 8388607
      %v1025 = vor.u32 %v1024, 8388608
      %v1026 = vsub.s32 0, %v1025
      %v1027 = vadd.s32 %v1022, 1
      %vm1028 = vcmp.gt.s32.totalorder %v1027, 0
      %v1029 = vsel %vm1028, %v1027, 0
      %v1030 = vshrl.u32 %v1029, 5
      %v1031 = vand.u32 %v1029, 31
      %v1032 = vsub.s32 32, %v1031
      %v1033 = vshrl.u32 683565275, %v1032
      %v1034 = vshll.u32 683565275, %v1031
      %v1035 = vshrl.u32 2475754826, %v1032
      %v1036 = vor.u32 %v1034, %v1035
      %v1037 = vshll.u32 2475754826, %v1031
      %v1038 = vshrl.u32 2131351028, %v1032
      %v1039 = vor.u32 %v1037, %v1038
      %v1040 = vshll.u32 2131351028, %v1031
      %v1041 = vshrl.u32 2102212464, %v1032
      %v1042 = vor.u32 %v1040, %v1041
      %v1043 = vshll.u32 2102212464, %v1031
      %v1044 = vshrl.u32 920167782, %v1032
      %v1045 = vor.u32 %v1043, %v1044
      %v1046 = vshll.u32 920167782, %v1031
      %v1047 = vshrl.u32 1326507024, %v1032
      %v1048 = vor.u32 %v1046, %v1047
      %vm1049 = vcmp.lt.s32.totalorder %v1030, 1
      %vm1050 = vcmp.lt.s32.totalorder %v1030, 2
      %vm1051 = vcmp.lt.s32.totalorder %v1030, 3
      %vm1052 = vcmp.lt.s32.totalorder %v1030, 4
      %v1053 = vsel %vm1049, %v1033, %v1036
      %v1054 = vsel %vm1052, %v1042, 2102212464
      %v1055 = vsel %vm1051, %v1039, %v1054
      %v1056 = vsel %vm1050, %v1053, %v1055
      %v1057 = vsel %vm1049, %v1036, %v1039
      %v1058 = vsel %vm1052, %v1045, 920167782
      %v1059 = vsel %vm1051, %v1042, %v1058
      %v1060 = vsel %vm1050, %v1057, %v1059
      %v1061 = vsel %vm1049, %v1039, %v1042
      %v1062 = vsel %vm1052, %v1048, 1326507024
      %v1063 = vsel %vm1051, %v1045, %v1062
      %v1064 = vsel %vm1050, %v1061, %v1063
      %v1065 = vshll.u32 %v1025, 8
      %v1066 = vmul.u32.u64.compose %v1065, %v1064
      %v1067 = vextract.low.u32 %v1066
      %v1068 = vextract.high.u32 %v1066
      %v1069 = vmul.u32.u64.compose %v1065, %v1060
      %v1070 = vextract.low.u32 %v1069
      %v1071 = vextract.high.u32 %v1069
      %v1072 = vmul.u32 %v1065, %v1056
      %v1073 = vadd.s32 %v1068, %v1070
      %vm1074 = vc.u32 %v1068, %v1070
      %v1075 = vadd.s32 %v1071, 1
      %v1076 = vsel %vm1074, %v1075, %v1071
      %v1077 = vadd.s32 %v1072, %v1076
      %v1078 = vadd.s32 %v1077, 536870912
      %v1079 = vshrl.u32 %v1078, 30
      %v1080 = vshll.u32 %v1079, 30
      %v1081 = vsub.s32 %v1077, %v1080
      %vm1082 = vcmp.lt.s32.totalorder %v1081, 0
      %v1083 = vsub.s32 0, %v1081
      %v1084 = vsel %vm1082, %v1083, %v1081
      %v1085 = vclz %v1084
      %v1086 = vsub.s32 %v1085, 2
      %vm1087 = vcmp.gt.s32.totalorder 0, %v1086
      %v1088 = vsel %vm1087, 0, %v1086
      %v1089 = vsub.s32 32, %v1088
      %v1090 = vshll.u32 %v1081, %v1088
      %v1091 = vshrl.u32 %v1073, %v1089
      %v1092 = vor.u32 %v1090, %v1091
      %v1093 = vsub.s32 4294967266, %v1088
      %v1094 = vadd.s32 %v1093, 127
      %v1095 = vshll.u32 %v1094, 23
      %v1096 = vor.u32 4788187, %v1095
      %v1097 = vand.u32 2147483647, %v1096
      %v1099 = vcvt.s32.f32 %v1092
      %v1100 = vmul.f32 %v1099, %v1097
      %v1101 = vxor.u32 %v1100, 2147483648
      %v1102 = vsel %vm1019, %v1101, %v1100
      %v1103 = vsub.s32 4, %v1079
      %v1104 = vsel %vm1019, %v1103, %v1079
      %v1105 = vsel %vm1018, %v289, %v1102
      %v1106 = vsel %vm1018, 0, %v1104
      %v1107 = vcosq.f32.pop %v1105
      %v1108 = vsinq.f32.pop %v1105
      %vm1109 = vweird.f32 %v289
      %v1110 = vand.u32 %v1106, 3
      %vm1111 = vcmp.lt.s32.totalorder %v1110, 2
      %vm1112 = vcmp.eq.s32.totalorder %v1110, 0
      %v1113 = vxor.u32 %v1108, 2147483648
      %v1114 = vsel %vm1112, %v1107, %v1113
      %vm1115 = vcmp.eq.s32.totalorder %v1110, 2
      %v1116 = vxor.u32 %v1107, 2147483648
      %v1117 = vsel %vm1115, %v1116, %v1108
      %v1118 = vsel %vm1111, %v1114, %v1117
      %v1119 = vsel %vm1109, nan, %v1118
      %v1120 = vpack.c.bf16 %v913, %v810
      %v1121 = vpack.c.bf16 %v1119, %v1016
      %v1122 = vld [vmem:[%s2] sm:$0xf]
      %v1123 = vld [vmem:[%s2 + $0x4] sm:$0xf]
      %v1124 = vld [vmem:[%s3] sm:$0xf]
      %v1125 = vld [vmem:[%s3 + $0x4] sm:$0xf]
      %v1128 = vunpack.c.l.b16 %v1124
      %v1129 = vunpack.c.l.b16 %v1125
      %v1130 = vpack.c.b16 %v1129, %v1128
      %vm1132 = vcmask 130048
      %v1134 = vsel %vm1132, %v1120, 0
      %v1137 = vsel %vm1132, %v1121, 0
      %1139 = vmatprep.subr.bf16.mxu0 0
      %1140 = vmatpush1.bf16.msra.mxu0 %v1130
      %1141 = vmatprep.subr.bf16.mxu0 0
      %1142 = vmatpush1.bf16.msra.mxu0 0
      %1143 = vmatprep.subr.bf16.mxu0 0
      %1144 = vmatpush1.bf16.msra.mxu0 0
      %1145 = vmatprep.subr.bf16.mxu0 0
      %1146 = vmatpush1.bf16.msra.mxu0 0
      %1147 = vmatprep.subr.bf16.mxu0 0
      %1148 = vmatpush1.bf16.msra.mxu0 0
      %1149 = vmatprep.subr.bf16.mxu0 0
      %1150 = vmatpush1.bf16.msra.mxu0 0
      %1151 = vmatprep.subr.bf16.mxu0 0
      %1152 = vmatpush1.bf16.msra.mxu0 0
      %1153 = vmatprep.subr.bf16.mxu0 0
      %1154 = vmatpush1.bf16.msra.mxu0 0
      %1155 = vmatprep.subr.bf16.mxu0 0
      %1156 = vmatpush1.bf16.msra.mxu0 0
      %1157 = vmatprep.subr.bf16.mxu0 0
      %1158 = vmatpush1.bf16.msra.mxu0 0
      %1159 = vmatprep.subr.bf16.mxu0 0
      %1160 = vmatpush1.bf16.msra.mxu0 0
      %1161 = vmatprep.subr.bf16.mxu0 0
      %1162 = vmatpush1.bf16.msra.mxu0 0
      %1163 = vmatprep.subr.bf16.mxu0 0
      %1164 = vmatpush1.bf16.msra.mxu0 0
      %1165 = vmatprep.subr.bf16.mxu0 0
      %1166 = vmatpush1.bf16.msra.mxu0 0
      %1167 = vmatprep.subr.bf16.mxu0 0
      %1168 = vmatpush1.bf16.msra.mxu0 0
      %1169 = vmatprep.subr.bf16.mxu0 0
      %1170 = vmatpush1.bf16.msra.mxu0 0
      %1171 = vmatprep.mubr.bf16.mxu0 0
      %1172 = vmatmul.mubr.bf16.gmra.mrb[0].mxu0 %v1134
      %v1173 = vpop.f32.mrb[0].mxu0
      %v1174 = vadd.f32 0.0, %v1173
      %v1175 = vpop.f32.mrb[0].mxu0
      %v1176 = vpop.f32.mrb[0].mxu0
      %v1177 = vadd.f32 0.0, %v1176
      %v1178 = vpop.f32.mrb[0].mxu0
      %1179 = vmatprep.mubr.bf16.mxu0 0
      %1180 = vmatmul.mubr.bf16.gmra.mrb[0].mxu0 %v1137
      %v1181 = vpop.f32.mrb[0].mxu0
      %v1182 = vadd.f32 0.0, %v1181
      %v1183 = vpop.f32.mrb[0].mxu0
      %v1184 = vpop.f32.mrb[0].mxu0
      %v1185 = vadd.f32 0.0, %v1184
      %v1186 = vpop.f32.mrb[0].mxu0
      %1187 = vdwg.mxu0
      %v1190 = vunpack.c.l.b16 %v1122
      %v1191 = vunpack.c.l.b16 %v1123
      %v1192 = vpack.c.b16 %v1191, %v1190
      %v1195 = vsel %vm1132, %v706, 0
      %v1198 = vsel %vm1132, %v707, 0
      %1200 = vmatprep.subr.bf16.mxu0 0
      %1201 = vmatpush1.bf16.msra.mxu0 %v1192
      %1202 = vmatprep.subr.bf16.mxu0 0
      %1203 = vmatpush1.bf16.msra.mxu0 0
      %1204 = vmatprep.subr.bf16.mxu0 0
      %1205 = vmatpush1.bf16.msra.mxu0 0
      %1206 = vmatprep.subr.bf16.mxu0 0
      %1207 = vmatpush1.bf16.msra.mxu0 0
      %1208 = vmatprep.subr.bf16.mxu0 0
      %1209 = vmatpush1.bf16.msra.mxu0 0
      %1210 = vmatprep.subr.bf16.mxu0 0
      %1211 = vmatpush1.bf16.msra.mxu0 0
      %1212 = vmatprep.subr.bf16.mxu0 0
      %1213 = vmatpush1.bf16.msra.mxu0 0
      %1214 = vmatprep.subr.bf16.mxu0 0
      %1215 = vmatpush1.bf16.msra.mxu0 0
      %1216 = vmatprep.subr.bf16.mxu0 0
      %1217 = vmatpush1.bf16.msra.mxu0 0
      %1218 = vmatprep.subr.bf16.mxu0 0
      %1219 = vmatpush1.bf16.msra.mxu0 0
      %1220 = vmatprep.subr.bf16.mxu0 0
      %1221 = vmatpush1.bf16.msra.mxu0 0
      %1222 = vmatprep.subr.bf16.mxu0 0
      %1223 = vmatpush1.bf16.msra.mxu0 0
      %1224 = vmatprep.subr.bf16.mxu0 0
      %1225 = vmatpush1.bf16.msra.mxu0 0
      %1226 = vmatprep.subr.bf16.mxu0 0
      %1227 = vmatpush1.bf16.msra.mxu0 0
      %1228 = vmatprep.subr.bf16.mxu0 0
      %1229 = vmatpush1.bf16.msra.mxu0 0
      %1230 = vmatprep.subr.bf16.mxu0 0
      %1231 = vmatpush1.bf16.msra.mxu0 0
      %1232 = vmatprep.mubr.bf16.mxu0 0
      %1233 = vmatmul.mubr.bf16.gmra.mrb[0].mxu0 %v1195
      %v1234 = vpop.f32.mrb[0].mxu0
      %v1235 = vadd.f32 %v1174, %v1234
      %v1236 = vpop.f32.mrb[0].mxu0
      %v1237 = vpop.f32.mrb[0].mxu0
      %v1238 = vadd.f32 %v1177, %v1237
      %v1239 = vpop.f32.mrb[0].mxu0
      %1240 = vmatprep.mubr.bf16.mxu0 0
      %1241 = vmatmul.mubr.bf16.gmra.mrb[0].mxu0 %v1198
      %v1242 = vpop.f32.mrb[0].mxu0
      %v1243 = vadd.f32 %v1182, %v1242
      %v1244 = vpop.f32.mrb[0].mxu0
      %v1245 = vpop.f32.mrb[0].mxu0
      %v1246 = vadd.f32 %v1185, %v1245
      %v1247 = vpop.f32.mrb[0].mxu0
      %1248 = vdwg.mxu0
      %v1249 = vld [vmem:[%s4] sm:$0x1]
      %v1251 = vlaneseq
      %v1252 = vshrl.u32 %v1251, 7
      %v1253 = vsub.s32 0, %v1252
      %v1254 = vrot.slane %v1249, %v1253
      %v1256 = vadd.f32 %v1235, %v1254
      %v1257 = vadd.f32 %v1238, %v1254
      %v1258 = vadd.f32 %v1243, %v1254
      %v1259 = vadd.f32 %v1246, %v1254
      %vm1260 = vcmask 261120
      %1261 = vst.msk [vmem:[%s226] sm:$0xff] %vm1260, %v1256
      %1262 = vst.msk [vmem:[%s226 + $0x8] sm:$0xff] %vm1260, %v1257
      %1263 = vst.msk [vmem:[%s226 + $0x10] sm:$0xff] %vm1260, %v1258
      %1264 = vst.msk [vmem:[%s226 + $0x18] sm:$0xff] %vm1260, %v1259
      %s1265 = smul.u32 4, %s16
      %p1266 = scmp.lt.s32.totalorder %s1265, 7
      %s1267 = scalar_select %p1266, %s1265, 7
      %s1268 = smul.addr %s1267, 8
      %s1269 = scalar_lea.vmem %s5, %s1268
      // Predicated region
      $region41: #{tpu_custom_call.1} parent=39 // pred_check
        %p1270 = pneg %p144
      $region42: #{tpu_custom_call.1} parent=39 // pred_check_branch
        %1272 = sbr.rel (%p1270) target = $region44
      $region43: #{tpu_custom_call.1} parent=39 // pred_region
        %s1273 = smul.u32 4, %s16
      $region44: #{tpu_custom_call.1} parent=39 // pred_fallthru
        _
    $region40: #{tpu_custom_call.1} parent=5 // pred_fallthru
      _
    %p1274 = scmp.le.s32.totalorder 2, %s11
    // Predicated region
    $region45: #{tpu_custom_call.1} parent=5 // pred_check
      %p1275 = pneg %p1274
    $region46: #{tpu_custom_call.1} parent=5 // pred_check_branch
      %1277 = sbr.rel (%p1275) target = $region48
    $region47: #{tpu_custom_call.1} parent=5 // pred_region
      %s1278 = ssub.s32 %s11, 2
      // Predicated region
      $region49: #{tpu_custom_call.1} parent=47 // pred_check
        %p1279 = pneg %p150
      $region50: #{tpu_custom_call.1} parent=47 // pred_check_branch
        %1281 = sbr.rel (%p1279) target = $region52
      $region51: #{tpu_custom_call.1} parent=47 // pred_region
        %s1282 = smul.u32 4, %s17
        %p1283 = scmp.lt.s32.totalorder %s1282, 7
        %s1284 = scalar_select %p1283, %s1282, 7
        %s1285 = smul.addr %s1284, 8
        %s1286 = scalar_lea.vmem %s5, %s1285
      $region52: #{tpu_custom_call.1} parent=47 // pred_fallthru
        _
    $region48: #{tpu_custom_call.1} parent=5 // pred_fallthru
      _
  $region6: #{tpu_custom_call.1} parent=0 // loop_footer
    %s15 = sadd.s32 1, %s11
  $region7: #{tpu_custom_call.1} parent=0 // loop_footer_branch
    %10 = sbr.rel target = $region3
  $region8: #{tpu_custom_call.1} parent=0 // loop_exit
    _

</llo_original>
